<compile_context>
chip_gen: v6e
topology: v6e:2x2x1
jax: 0.10.0
libtpu: 0.0.40
codegen_flags: <defaults>
</compile_context>

<pallas_src>
import functools

import numpy as np
import jax
import jax.numpy as jnp
from jax.experimental import pallas as pl
from jax.experimental.pallas import tpu as pltpu


# ----------------------------------------------------------------------------
# Config (small shapes)
# ----------------------------------------------------------------------------
CFG = dict(
    batch=2,
    seq_len=16,
    pred_len=8,
    enc_in=4,          # n_vars
    d_model=32,
    n_heads=4,
    e_layers=1,
    d_ff=64,
    num_experts=4,
    k=2,
    moving_avg=5,
    activation="gelu",
)


def _vmem_spec():
    return pl.BlockSpec(memory_space=pltpu.MemorySpace.VMEM)


# ----------------------------------------------------------------------------
# Single fused kernel: cluster (RevIN norm + top-k gating + MoE of DLinear
# experts) + Mahalanobis channel mask + channel transformer + linear head +
# RevIN denorm.
# ----------------------------------------------------------------------------
def _duet_kernel(ci_ref, wA_ref, wExp_ref, wLay_ref, wHead_ref, vec_ref, out_ref,
                 *, n_batch, n_vars, n_experts, n_heads, n_layers,
                 d_model, d_ff, seq_len, pred_len, k_top, activation):
    B, N, E, H, D = n_batch, n_vars, n_experts, n_heads, d_model
    L, P = seq_len, pred_len
    F = L // 2 + 1
    dh = D // H
    M = B * N

    # wA column offsets: [gate_w(E) | mavg(L) | dft_cos(F) | dft_sin(F) | maha_A^T(F)]
    O_GATE, O_MAVG, O_DFT, O_MAHA = 0, E, E + L, E + L + 2 * F
    # wLay column offsets: [Wqkv(3D) | Wo(D) | W1(d_ff) | W2(D)]
    C_QKV, C_WO, C_W1, C_W2 = 0, 3 * D, 4 * D, 4 * D + d_ff

    def layer_norm(v, g, b):
        mu = jnp.mean(v, axis=-1, keepdims=True)
        var = jnp.mean((v - mu) ** 2, axis=-1, keepdims=True)
        return (v - mu) * jax.lax.rsqrt(var + 1e-5) * g + b

    ci = ci_ref[...].astype(jnp.float32)                      # (M, L) raw CI rows

    # --- RevIN 'norm' over the time axis -------------------------------------
    mean = jnp.mean(ci, axis=-1, keepdims=True)
    var = jnp.mean((ci - mean) ** 2, axis=-1, keepdims=True)
    std = jnp.sqrt(var + 1e-5)
    xn = (ci - mean) / std
    # TODO(synk): cluster RevIN affine treated as a scalar (CI view has 1 feature).
    revin_w = vec_ref[2:3, 0:1]
    revin_b = vec_ref[2:3, 1:2]
    xn = xn * revin_w + revin_b

    # --- fused gate-logits + trend matmul: xn @ [gate_w | mavg] --------------
    xn_bf = xn.astype(jnp.bfloat16)
    gm = jnp.dot(xn_bf, wA_ref[:, O_GATE:O_DFT],
                 preferred_element_type=jnp.float32)          # (M, E+L)
    logits = gm[:, 0:E] + vec_ref[0:1, 0:E]
    trend = gm[:, E:E + L]
    seasonal = xn - trend

    # --- noisy-top-k gating (eval path: softmax -> top-k -> renormalize) -----
    # TODO(synk): training-time gating noise + load-balancing loss not modelled.
    lmax = jnp.max(logits, axis=-1, keepdims=True)
    le = jnp.exp(logits - lmax)
    probs = le / jnp.sum(le, axis=-1, keepdims=True)

    col = jax.lax.broadcasted_iota(jnp.int32, probs.shape, 1)
    remaining = probs
    sel_vals = jnp.zeros_like(probs)
    for _ in range(k_top):                                    # static unroll (k=2)
        mx = jnp.max(remaining, axis=-1, keepdims=True)
        cand = jnp.where(remaining >= mx, col, E)
        amin = jnp.min(cand, axis=-1, keepdims=True)          # first argmax (torch.topk)
        onehot = (col == amin).astype(jnp.float32)
        sel_vals = sel_vals + onehot * remaining
        remaining = jnp.where(onehot > 0.0, -1.0, remaining)
    gates = sel_vals / (jnp.sum(sel_vals, axis=-1, keepdims=True) + 1e-6)   # (M, E)

    # --- MoE: one K-fused (M, 2L) @ (2L, E*D) lane-dense matmul ---------------
    st = jnp.concatenate([seasonal, trend], axis=-1).astype(jnp.bfloat16)   # (M, 2L)
    expert_all = jnp.dot(st, wExp_ref[...],
                         preferred_element_type=jnp.float32) + vec_ref[1:2, 0:E * D]
    temporal = jnp.zeros((M, D), jnp.float32)
    for e in range(E):                                        # static unroll
        temporal = temporal + gates[:, e:e + 1] * expert_all[:, e * D:(e + 1) * D]

    # --- Mahalanobis channel-correlation mask ---------------------------------
    # rfft magnitude via one fused DFT matmul: ci @ [cos | sin]
    ci_bf = ci.astype(jnp.bfloat16)
    ri = jnp.dot(ci_bf, wA_ref[:, O_DFT:O_MAHA],
                 preferred_element_type=jnp.float32)          # (M, 2F)
    re, im = ri[:, 0:F], ri[:, F:2 * F]
    xf = jnp.sqrt(re * re + im * im)                          # (M, F)
    # y = xf @ A.T (A^T zero-padded to L rows in the slab; pad xf to match)
    xf_pad = jnp.concatenate([xf, jnp.zeros((M, L - F), jnp.float32)], axis=-1)
    y = jnp.dot(xf_pad.astype(jnp.bfloat16), wA_ref[:, O_MAHA:O_MAHA + F],
                preferred_element_type=jnp.float32)           # (M, F)

    rr = jax.lax.broadcasted_iota(jnp.int32, (N, N), 0)
    cc = jax.lax.broadcasted_iota(jnp.int32, (N, N), 1)
    eye = (rr == cc).astype(jnp.float32)
    off = 1.0 - eye
    attn_bias = []                                            # per-batch additive bias
    for b in range(B):                                        # static unroll
        yb = y[b * N:(b + 1) * N, :]                          # (N, F)
        gram = jax.lax.dot_general(yb, yb, (((1,), (1,)), ((), ())),
                                   preferred_element_type=jnp.float32)
        sq = jnp.sum(yb * yb, axis=-1, keepdims=True)
        dist = jnp.maximum(sq + sq.reshape(1, N) - 2.0 * gram, 0.0)
        # DUET's Mahalanobis_mask: inverse-distance similarity, row-max normalized.
        sim = (1.0 / (dist + 1e-10)) * off
        smax = jnp.max(sim, axis=-1, keepdims=True)
        p = (sim / smax) * off + eye                          # diagonal prob = 1
        # TODO(synk): bernoulli-gumbel resampling of the channel mask replaced by a
        # deterministic >= 0.5 threshold (additive bias, hoisted out of head/layer loops).
        attn_bias.append(jnp.where(p >= 0.5, 0.0, -1e30))

    # --- channel transformer (all encoder layers) -----------------------------
    scale = 1.0 / float(dh) ** 0.5
    x = temporal
    for l in range(n_layers):                                 # static unroll
        r = 6 + 8 * l                                         # vec-slab row base for layer l
        # fused Q/K/V projection: one (M,D) @ (D,3D) matmul
        qkv = jnp.dot(x.astype(jnp.bfloat16), wLay_ref[l, 0:D, C_QKV:C_WO],
                      preferred_element_type=jnp.float32) + vec_ref[r:r + 1, 0:3 * D]
        q, k, v = qkv[:, 0:D], qkv[:, D:2 * D], qkv[:, 2 * D:3 * D]
        q_bf = q.astype(jnp.bfloat16)
        k_bf = k.astype(jnp.bfloat16)
        v_bf = v.astype(jnp.bfloat16)

        batch_outs = []
        for b in range(B):                                    # all (batch, head) tiles
            r0, r1 = b * N, (b + 1) * N                       # unrolled, kept in vregs
            bias_b = attn_bias[b]
            head_outs = []
            for hh in range(H):
                c0, c1 = hh * dh, (hh + 1) * dh
                qh, kh, vh = q_bf[r0:r1, c0:c1], k_bf[r0:r1, c0:c1], v_bf[r0:r1, c0:c1]
                s = jax.lax.dot_general(qh, kh, (((1,), (1,)), ((), ())),
                                        preferred_element_type=jnp.float32) * scale
                s = s + bias_b                                # f32 score math + f32 mask
                s = s - jnp.max(s, axis=-1, keepdims=True)
                pw = jnp.exp(s)
                pw = pw * pl.reciprocal(jnp.sum(pw, axis=-1, keepdims=True), approx=True)
                head_outs.append(jnp.dot(pw.astype(jnp.bfloat16), vh,
                                         preferred_element_type=jnp.float32))
            batch_outs.append(jnp.concatenate(head_outs, axis=-1))   # (N, D)
        attn = jnp.concatenate(batch_outs, axis=0)            # (M, D), assembled in vregs

        attn_out = jnp.dot(attn.astype(jnp.bfloat16), wLay_ref[l, 0:D, C_WO:C_W1],
                           preferred_element_type=jnp.float32) + vec_ref[r + 1:r + 2, 0:D]
        x1 = layer_norm(x + attn_out,
                        vec_ref[r + 4:r + 5, 0:D], vec_ref[r + 5:r + 6, 0:D])
        y1 = jnp.dot(x1.astype(jnp.bfloat16), wLay_ref[l, 0:D, C_W1:C_W2],
                     preferred_element_type=jnp.float32) + vec_ref[r + 2:r + 3, 0:d_ff]
        y1 = jnp.maximum(y1, 0.0) if activation == "relu" else jax.nn.gelu(y1)
        y2 = jnp.dot(y1.astype(jnp.bfloat16), wLay_ref[l, 0:d_ff, C_W2:C_W2 + D],
                     preferred_element_type=jnp.float32) + vec_ref[r + 3:r + 4, 0:D]
        x = layer_norm(x1 + y2,
                       vec_ref[r + 6:r + 7, 0:D], vec_ref[r + 7:r + 8, 0:D])

    # --- final encoder LayerNorm + linear head + RevIN 'denorm' ---------------
    x = layer_norm(x, vec_ref[3:4, 0:D], vec_ref[4:5, 0:D])
    out = jnp.dot(x.astype(jnp.bfloat16), wHead_ref[...],
                  preferred_element_type=jnp.float32) + vec_ref[5:6, 0:P]
    out = (out - revin_b) / (revin_w + 1e-10)
    out = out * std + mean
    out_ref[...] = out.astype(out_ref.dtype)


# ----------------------------------------------------------------------------
# Constant operator matrices (series_decomp moving average, rfft magnitude)
# ----------------------------------------------------------------------------
def _moving_avg_matrix(seq_len, kernel_size):
    """series_decomp moving average (replicate padding) as an (L, L) matrix."""
    pad = (kernel_size - 1) // 2
    m = np.zeros((seq_len, seq_len), dtype=np.float32)
    for t in range(seq_len):
        for j in range(kernel_size):
            src = min(max(t + j - pad, 0), seq_len - 1)
            m[src, t] += 1.0 / kernel_size
    return jnp.asarray(m)


def _rdft_matrices(seq_len):
    """cos/sin bases so that |rfft(x)| = sqrt((x@C)^2 + (x@S)^2)."""
    n_freq = seq_len // 2 + 1
    t = np.arange(seq_len, dtype=np.float64)[:, None]
    f = np.arange(n_freq, dtype=np.float64)[None, :]
    ang = 2.0 * np.pi * t * f / seq_len
    return (jnp.asarray(np.cos(ang), dtype=jnp.float32),
            jnp.asarray(np.sin(ang), dtype=jnp.float32))


# ----------------------------------------------------------------------------
# Forward (CI=True branch, n_vars > 1 branch).  Returns (output, 0).
# ----------------------------------------------------------------------------
def duet_forward(params, x, cfg):
    B, L, N = x.shape
    D, P, M = cfg["d_model"], cfg["pred_len"], x.shape[0] * x.shape[2]

    # 'b l n -> (b n) l'  (channel-independent rows; also feeds the mask branch)
    ci = jnp.transpose(x, (0, 2, 1)).reshape(M, L)

    out = pl.pallas_call(
        functools.partial(_duet_kernel, n_batch=B, n_vars=N,
                          n_experts=cfg["num_experts"], n_heads=cfg["n_heads"],
                          n_layers=cfg["e_layers"], d_model=D, d_ff=cfg["d_ff"],
                          seq_len=L, pred_len=P, k_top=cfg["k"],
                          activation=cfg["activation"]),
        out_shape=jax.ShapeDtypeStruct((M, P), jnp.float32),
        in_specs=[_vmem_spec() for _ in range(6)],
        out_specs=_vmem_spec(),
    )(ci, params["wA"], params["wExp"], params["wLay"], params["wHead"], params["vec"])

    # '(b n) p -> b n p -> b p n'
    out = jnp.transpose(out.reshape(B, N, P), (0, 2, 1))
    return out, 0


# ----------------------------------------------------------------------------
# Deterministic parameter init, packed into a handful of lane-dense slabs:
#   wA    (L, E+L+3F)        bf16  [gate_w | mavg | dft_cos | dft_sin | maha_A^T]
#   wExp  (2L, E*D)          bf16  [ws_p ; wt_p]    (lane-dense 128)
#   wLay  (n_layers,64,224)  bf16  per-layer [Wqkv | Wo | W1 | W2]
#   wHead (D, pred_len)      bf16
#   vec   (6+8*layers, 128)  f32   all biases / norm params / revin scalars
# ----------------------------------------------------------------------------
def init_params(key, cfg):
    L, D, E = cfg["seq_len"], cfg["d_model"], cfg["num_experts"]
    F = L // 2 + 1
    d_ff, P, n_layers = cfg["d_ff"], cfg["pred_len"], cfg["e_layers"]
    keys = jax.random.split(key, 64)
    kit = iter(keys)

    def dense(shape, scale=0.05):
        return jax.random.normal(next(kit), shape, jnp.float32) * scale

    def padrow(v):
        v = jnp.ravel(jnp.asarray(v, jnp.float32))
        return jnp.zeros((128,), jnp.float32).at[:v.shape[0]].set(v)

    # kernel-A K=16 RHS slab
    gate_w = dense((L, E))
    mavg = _moving_avg_matrix(L, cfg["moving_avg"])
    dft_cos, dft_sin = _rdft_matrices(L)
    maha_A = dense((F, F), scale=0.2)
    maha_At_pad = jnp.zeros((L, F), jnp.float32).at[0:F, :].set(maha_A.T)
    wA = jnp.concatenate([gate_w, mavg, dft_cos, dft_sin, maha_At_pad], axis=1)

    # experts packed so the MoE is a single (2L, E*D) lane-dense matmul
    ws = dense((E, L, D))     # per-expert seasonal Linear(seq_len, d_model)
    wt = dense((E, L, D))     # per-expert trend Linear
    wb = dense((E, D))        # per-expert combined bias
    ws_p = jnp.transpose(ws, (1, 0, 2)).reshape(L, E * D)
    wt_p = jnp.transpose(wt, (1, 0, 2)).reshape(L, E * D)
    wExp = jnp.concatenate([ws_p, wt_p], axis=0)              # (2L, E*D)

    head_w = dense((D, P))

    # vector slab (biases / norm params)
    vec_rows = [
        padrow(jnp.zeros((E,))),              # 0: gate_b
        padrow(wb.reshape(E * D)),            # 1: packed expert bias
        padrow(jnp.array([1.0, 0.0])),        # 2: revin weight, bias
        padrow(jnp.ones((D,))),               # 3: encoder final norm gamma
        padrow(jnp.zeros((D,))),              # 4: encoder final norm beta
        padrow(jnp.zeros((P,))),              # 5: head bias
    ]

    # per-layer weight slabs: rows 0:D -> [Wqkv | Wo | W1], rows 0:d_ff -> W2
    lay_rows, lay_cols = max(D, d_ff), 4 * D + d_ff + D
    wLay_list = []
    for _ in range(n_layers):
        wq, wk, wv = dense((D, D)), dense((D, D)), dense((D, D))
        wo, w1, w2 = dense((D, D)), dense((D, d_ff)), dense((d_ff, D))
        slab = jnp.zeros((lay_rows, lay_cols), jnp.float32)
        slab = slab.at[0:D, 0:3 * D].set(jnp.concatenate([wq, wk, wv], axis=1))
        slab = slab.at[0:D, 3 * D:4 * D].set(wo)
        slab = slab.at[0:D, 4 * D:4 * D + d_ff].set(w1)
        slab = slab.at[0:d_ff, 4 * D + d_ff:4 * D + d_ff + D].set(w2)
        wLay_list.append(slab)
        vec_rows.extend([
            padrow(jnp.zeros((3 * D,))),      # bqkv
            padrow(jnp.zeros((D,))),          # bo
            padrow(jnp.zeros((d_ff,))),       # b1
            padrow(jnp.zeros((D,))),          # b2
            padrow(jnp.ones((D,))),           # norm1 gamma
            padrow(jnp.zeros((D,))),          # norm1 beta
            padrow(jnp.ones((D,))),           # norm2 gamma
            padrow(jnp.zeros((D,))),          # norm2 beta
        ])

    return dict(
        wA=wA.astype(jnp.bfloat16),
        wExp=wExp.astype(jnp.bfloat16),
        wLay=jnp.stack(wLay_list, axis=0).astype(jnp.bfloat16),
        wHead=head_w.astype(jnp.bfloat16),
        vec=jnp.stack(vec_rows, axis=0),
    )


# ----------------------------------------------------------------------------
if __name__ == "__main__":
    cfg = CFG
    key = jax.random.PRNGKey(0)
    k_param, k_x = jax.random.split(key)

    params = init_params(k_param, cfg)
    x = jax.random.normal(k_x, (cfg["batch"], cfg["seq_len"], cfg["enc_in"]), jnp.float32)
    # x_mark_enc / x_dec / x_mark_dec are unused by Model.forward; dummies:
    x_mark_enc = jnp.zeros((cfg["batch"], cfg["seq_len"], 1), jnp.float32)
    x_dec = jnp.zeros((cfg["batch"], cfg["pred_len"], cfg["enc_in"]), jnp.float32)
    x_mark_dec = jnp.zeros((cfg["batch"], cfg["pred_len"], 1), jnp.float32)

    fwd = jax.jit(lambda p, xx: duet_forward(p, xx, cfg))
    out, aux = fwd(params, x)
    out = jax.block_until_ready(out)

    assert out.shape == (cfg["batch"], cfg["pred_len"], cfg["enc_in"])
    assert bool(jnp.all(jnp.isfinite(out)))
    print("KERNEL_OK")
</pallas_src>

<mosaic_0001>
module attributes {stable_mosaic.version = 11 : i64} {
  func.func @_duet_kernel(%arg0: memref<8x16xf32, #tpu.memory_space<vmem>>, %arg1: memref<16x47xbf16, #tpu.memory_space<vmem>>, %arg2: memref<32x128xbf16, #tpu.memory_space<vmem>>, %arg3: memref<1x64x224xbf16, #tpu.memory_space<vmem>>, %arg4: memref<32x8xbf16, #tpu.memory_space<vmem>>, %arg5: memref<14x128xf32, #tpu.memory_space<vmem>>, %arg6: memref<8x8xf32, #tpu.memory_space<vmem>>) attributes {dimension_semantics = [], scalar_prefetch = 0 : i64, scratch_operands = 0 : i64, tpu.core_type = #tpu.core_type<tc>} {
    %c0 = arith.constant 0 : index
    %c0_0 = arith.constant 0 : index
    %0 = vector.load %arg0[%c0, %c0_0] : memref<8x16xf32, #tpu.memory_space<vmem>>, vector<8x16xf32>
    %cst = arith.constant dense<0.000000e+00> : vector<8xf32>
    %1 = vector.multi_reduction <add>, %0, %cst [1] : vector<8x16xf32> to vector<8xf32>
    %2 = vector.shape_cast %1 : vector<8xf32> to vector<8x1xf32>
    %cst_1 = arith.constant 1.600000e+01 : f32
    %3 = vector.broadcast %cst_1 : f32 to vector<8x1xf32>
    %4 = arith.divf %2, %3 : vector<8x1xf32>
    %5 = vector.broadcast %4 : vector<8x1xf32> to vector<8x16xf32>
    %6 = arith.subf %0, %5 : vector<8x16xf32>
    %7 = arith.mulf %6, %6 : vector<8x16xf32>
    %cst_2 = arith.constant dense<0.000000e+00> : vector<8xf32>
    %8 = vector.multi_reduction <add>, %7, %cst_2 [1] : vector<8x16xf32> to vector<8xf32>
    %9 = vector.shape_cast %8 : vector<8xf32> to vector<8x1xf32>
    %cst_3 = arith.constant 1.600000e+01 : f32
    %10 = vector.broadcast %cst_3 : f32 to vector<8x1xf32>
    %11 = arith.divf %9, %10 : vector<8x1xf32>
    %cst_4 = arith.constant 9.99999974E-6 : f32
    %12 = vector.broadcast %cst_4 : f32 to vector<8x1xf32>
    %13 = arith.addf %11, %12 : vector<8x1xf32>
    %14 = math.sqrt %13 : vector<8x1xf32>
    %15 = vector.broadcast %4 : vector<8x1xf32> to vector<8x16xf32>
    %16 = arith.subf %0, %15 : vector<8x16xf32>
    %17 = vector.broadcast %14 : vector<8x1xf32> to vector<8x16xf32>
    %18 = arith.divf %16, %17 : vector<8x16xf32>
    %c2 = arith.constant 2 : index
    %c0_5 = arith.constant 0 : index
    %19 = vector.load %arg5[%c2, %c0_5] : memref<14x128xf32, #tpu.memory_space<vmem>>, vector<1x1xf32>
    %c2_6 = arith.constant 2 : index
    %c1 = arith.constant 1 : index
    %20 = vector.load %arg5[%c2_6, %c1] : memref<14x128xf32, #tpu.memory_space<vmem>>, vector<1x1xf32>
    %21 = vector.broadcast %19 : vector<1x1xf32> to vector<8x16xf32>
    %22 = arith.mulf %18, %21 : vector<8x16xf32>
    %23 = vector.broadcast %20 : vector<1x1xf32> to vector<8x16xf32>
    %24 = arith.addf %22, %23 : vector<8x16xf32>
    %25 = arith.truncf %24 : vector<8x16xf32> to vector<8x16xbf16>
    %c0_7 = arith.constant 0 : index
    %c0_8 = arith.constant 0 : index
    %26 = vector.load %arg1[%c0_7, %c0_8] : memref<16x47xbf16, #tpu.memory_space<vmem>>, vector<16x20xbf16>
    %cst_9 = arith.constant dense<0.000000e+00> : vector<8x20xf32>
    %27 = tpu.matmul %25, %26, %cst_9 {dimension_numbers = #tpu.dot_dimension_numbers<[1], [0], [0], [1], [0, 0, 1, 1], [], []>} : vector<8x16xbf16>, vector<16x20xbf16>, vector<8x20xf32> -> vector<8x20xf32>
    %28 = vector.extract_strided_slice %27 {offsets = [0, 0], sizes = [8, 4], strides = [1, 1]} : vector<8x20xf32> to vector<8x4xf32>
    %c0_10 = arith.constant 0 : index
    %c0_11 = arith.constant 0 : index
    %29 = vector.load %arg5[%c0_10, %c0_11] : memref<14x128xf32, #tpu.memory_space<vmem>>, vector<1x4xf32>
    %30 = vector.broadcast %29 : vector<1x4xf32> to vector<8x4xf32>
    %31 = arith.addf %28, %30 : vector<8x4xf32>
    %32 = vector.extract_strided_slice %27 {offsets = [0, 4], sizes = [8, 16], strides = [1, 1]} : vector<8x20xf32> to vector<8x16xf32>
    %33 = arith.subf %24, %32 : vector<8x16xf32>
    %cst_12 = arith.constant dense<0xFF800000> : vector<8xf32>
    %34 = vector.multi_reduction <maximumf>, %31, %cst_12 [1] : vector<8x4xf32> to vector<8xf32>
    %35 = vector.shape_cast %34 : vector<8xf32> to vector<8x1xf32>
    %36 = vector.broadcast %35 : vector<8x1xf32> to vector<8x4xf32>
    %37 = arith.subf %31, %36 : vector<8x4xf32>
    %38 = math.exp %37 : vector<8x4xf32>
    %cst_13 = arith.constant dense<0.000000e+00> : vector<8xf32>
    %39 = vector.multi_reduction <add>, %38, %cst_13 [1] : vector<8x4xf32> to vector<8xf32>
    %40 = vector.shape_cast %39 : vector<8xf32> to vector<8x1xf32>
    %41 = vector.broadcast %40 : vector<8x1xf32> to vector<8x4xf32>
    %42 = arith.divf %38, %41 : vector<8x4xf32>
    %43 = tpu.iota {dimensions = array<i32: 1>} : vector<8x4xi32>
    %cst_14 = arith.constant 0.000000e+00 : f32
    %44 = vector.broadcast %cst_14 : f32 to vector<8x4xf32>
    %cst_15 = arith.constant dense<0xFF800000> : vector<8xf32>
    %45 = vector.multi_reduction <maximumf>, %42, %cst_15 [1] : vector<8x4xf32> to vector<8xf32>
    %46 = vector.shape_cast %45 : vector<8xf32> to vector<8x1xf32>
    %47 = vector.broadcast %46 : vector<8x1xf32> to vector<8x4xf32>
    %48 = arith.cmpf oge, %42, %47 : vector<8x4xf32>
    %c4_i32 = arith.constant 4 : i32
    %49 = vector.broadcast %c4_i32 : i32 to vector<8x4xi32>
    %50 = arith.select %48, %43, %49 : vector<8x4xi1>, vector<8x4xi32>
    %cst_16 = arith.constant dense<2147483647> : vector<8xi32>
    %51 = vector.multi_reduction <minsi>, %50, %cst_16 [1] : vector<8x4xi32> to vector<8xi32>
    %52 = vector.shape_cast %51 : vector<8xi32> to vector<8x1xi32>
    %53 = vector.broadcast %52 : vector<8x1xi32> to vector<8x4xi32>
    %54 = arith.cmpi eq, %43, %53 : vector<8x4xi32>
    %55 = arith.extui %54 : vector<8x4xi1> to vector<8x4xi32>
    %56 = arith.sitofp %55 : vector<8x4xi32> to vector<8x4xf32>
    %57 = arith.mulf %56, %42 : vector<8x4xf32>
    %58 = arith.addf %44, %57 : vector<8x4xf32>
    %cst_17 = arith.constant 0.000000e+00 : f32
    %59 = vector.broadcast %cst_17 : f32 to vector<8x4xf32>
    %60 = arith.cmpf ogt, %56, %59 : vector<8x4xf32>
    %cst_18 = arith.constant -1.000000e+00 : f32
    %61 = vector.broadcast %cst_18 : f32 to vector<8x4xf32>
    %62 = arith.select %60, %61, %42 : vector<8x4xi1>, vector<8x4xf32>
    %cst_19 = arith.constant dense<0xFF800000> : vector<8xf32>
    %63 = vector.multi_reduction <maximumf>, %62, %cst_19 [1] : vector<8x4xf32> to vector<8xf32>
    %64 = vector.shape_cast %63 : vector<8xf32> to vector<8x1xf32>
    %65 = vector.broadcast %64 : vector<8x1xf32> to vector<8x4xf32>
    %66 = arith.cmpf oge, %62, %65 : vector<8x4xf32>
    %c4_i32_20 = arith.constant 4 : i32
    %67 = vector.broadcast %c4_i32_20 : i32 to vector<8x4xi32>
    %68 = arith.select %66, %43, %67 : vector<8x4xi1>, vector<8x4xi32>
    %cst_21 = arith.constant dense<2147483647> : vector<8xi32>
    %69 = vector.multi_reduction <minsi>, %68, %cst_21 [1] : vector<8x4xi32> to vector<8xi32>
    %70 = vector.shape_cast %69 : vector<8xi32> to vector<8x1xi32>
    %71 = vector.broadcast %70 : vector<8x1xi32> to vector<8x4xi32>
    %72 = arith.cmpi eq, %43, %71 : vector<8x4xi32>
    %73 = arith.extui %72 : vector<8x4xi1> to vector<8x4xi32>
    %74 = arith.sitofp %73 : vector<8x4xi32> to vector<8x4xf32>
    %75 = arith.mulf %74, %62 : vector<8x4xf32>
    %76 = arith.addf %58, %75 : vector<8x4xf32>
    %cst_22 = arith.constant dense<0.000000e+00> : vector<8xf32>
    %77 = vector.multi_reduction <add>, %76, %cst_22 [1] : vector<8x4xf32> to vector<8xf32>
    %78 = vector.shape_cast %77 : vector<8xf32> to vector<8x1xf32>
    %cst_23 = arith.constant 9.99999997E-7 : f32
    %79 = vector.broadcast %cst_23 : f32 to vector<8x1xf32>
    %80 = arith.addf %78, %79 : vector<8x1xf32>
    %81 = vector.broadcast %80 : vector<8x1xf32> to vector<8x4xf32>
    %82 = arith.divf %76, %81 : vector<8x4xf32>
    %83 = tpu.concatenate %33, %32 in 1 : vector<8x16xf32>, vector<8x16xf32> -> vector<8x32xf32>
    %84 = arith.truncf %83 : vector<8x32xf32> to vector<8x32xbf16>
    %c0_24 = arith.constant 0 : index
    %c0_25 = arith.constant 0 : index
    %85 = vector.load %arg2[%c0_24, %c0_25] : memref<32x128xbf16, #tpu.memory_space<vmem>>, vector<32x128xbf16>
    %cst_26 = arith.constant dense<0.000000e+00> : vector<8x128xf32>
    %86 = tpu.matmul %84, %85, %cst_26 {dimension_numbers = #tpu.dot_dimension_numbers<[1], [0], [0], [1], [0, 0, 1, 1], [], []>} : vector<8x32xbf16>, vector<32x128xbf16>, vector<8x128xf32> -> vector<8x128xf32>
    %c1_27 = arith.constant 1 : index
    %c0_28 = arith.constant 0 : index
    %87 = vector.load %arg5[%c1_27, %c0_28] : memref<14x128xf32, #tpu.memory_space<vmem>>, vector<1x128xf32>
    %88 = vector.broadcast %87 : vector<1x128xf32> to vector<8x128xf32>
    %89 = arith.addf %86, %88 : vector<8x128xf32>
    %cst_29 = arith.constant 0.000000e+00 : f32
    %90 = vector.broadcast %cst_29 : f32 to vector<8x32xf32>
    %91 = vector.extract_strided_slice %82 {offsets = [0, 0], sizes = [8, 1], strides = [1, 1]} : vector<8x4xf32> to vector<8x1xf32>
    %92 = vector.extract_strided_slice %89 {offsets = [0, 0], sizes = [8, 32], strides = [1, 1]} : vector<8x128xf32> to vector<8x32xf32>
    %93 = vector.broadcast %91 : vector<8x1xf32> to vector<8x32xf32>
    %94 = arith.mulf %93, %92 : vector<8x32xf32>
    %95 = arith.addf %90, %94 : vector<8x32xf32>
    %96 = vector.extract_strided_slice %82 {offsets = [0, 1], sizes = [8, 1], strides = [1, 1]} : vector<8x4xf32> to vector<8x1xf32>
    %97 = vector.extract_strided_slice %89 {offsets = [0, 32], sizes = [8, 32], strides = [1, 1]} : vector<8x128xf32> to vector<8x32xf32>
    %98 = vector.broadcast %96 : vector<8x1xf32> to vector<8x32xf32>
    %99 = arith.mulf %98, %97 : vector<8x32xf32>
    %100 = arith.addf %95, %99 : vector<8x32xf32>
    %101 = vector.extract_strided_slice %82 {offsets = [0, 2], sizes = [8, 1], strides = [1, 1]} : vector<8x4xf32> to vector<8x1xf32>
    %102 = vector.extract_strided_slice %89 {offsets = [0, 64], sizes = [8, 32], strides = [1, 1]} : vector<8x128xf32> to vector<8x32xf32>
    %103 = vector.broadcast %101 : vector<8x1xf32> to vector<8x32xf32>
    %104 = arith.mulf %103, %102 : vector<8x32xf32>
    %105 = arith.addf %100, %104 : vector<8x32xf32>
    %106 = vector.extract_strided_slice %82 {offsets = [0, 3], sizes = [8, 1], strides = [1, 1]} : vector<8x4xf32> to vector<8x1xf32>
    %107 = vector.extract_strided_slice %89 {offsets = [0, 96], sizes = [8, 32], strides = [1, 1]} : vector<8x128xf32> to vector<8x32xf32>
    %108 = vector.broadcast %106 : vector<8x1xf32> to vector<8x32xf32>
    %109 = arith.mulf %108, %107 : vector<8x32xf32>
    %110 = arith.addf %105, %109 : vector<8x32xf32>
    %111 = arith.truncf %0 : vector<8x16xf32> to vector<8x16xbf16>
    %c0_30 = arith.constant 0 : index
    %c20 = arith.constant 20 : index
    %112 = vector.load %arg1[%c0_30, %c20] : memref<16x47xbf16, #tpu.memory_space<vmem>>, vector<16x18xbf16>
    %cst_31 = arith.constant dense<0.000000e+00> : vector<8x18xf32>
    %113 = tpu.matmul %111, %112, %cst_31 {dimension_numbers = #tpu.dot_dimension_numbers<[1], [0], [0], [1], [0, 0, 1, 1], [], []>} : vector<8x16xbf16>, vector<16x18xbf16>, vector<8x18xf32> -> vector<8x18xf32>
    %114 = vector.extract_strided_slice %113 {offsets = [0, 0], sizes = [8, 9], strides = [1, 1]} : vector<8x18xf32> to vector<8x9xf32>
    %115 = vector.extract_strided_slice %113 {offsets = [0, 9], sizes = [8, 9], strides = [1, 1]} : vector<8x18xf32> to vector<8x9xf32>
    %116 = arith.mulf %114, %114 : vector<8x9xf32>
    %117 = arith.mulf %115, %115 : vector<8x9xf32>
    %118 = arith.addf %116, %117 : vector<8x9xf32>
    %119 = math.sqrt %118 : vector<8x9xf32>
    %cst_32 = arith.constant 0.000000e+00 : f32
    %120 = vector.broadcast %cst_32 : f32 to vector<8x7xf32>
    %121 = tpu.concatenate %119, %120 in 1 : vector<8x9xf32>, vector<8x7xf32> -> vector<8x16xf32>
    %122 = arith.truncf %121 : vector<8x16xf32> to vector<8x16xbf16>
    %c0_33 = arith.constant 0 : index
    %c38 = arith.constant 38 : index
    %123 = vector.load %arg1[%c0_33, %c38] : memref<16x47xbf16, #tpu.memory_space<vmem>>, vector<16x9xbf16>
    %cst_34 = arith.constant dense<0.000000e+00> : vector<8x9xf32>
    %124 = tpu.matmul %122, %123, %cst_34 {dimension_numbers = #tpu.dot_dimension_numbers<[1], [0], [0], [1], [0, 0, 1, 1], [], []>} : vector<8x16xbf16>, vector<16x9xbf16>, vector<8x9xf32> -> vector<8x9xf32>
    %125 = tpu.iota {dimensions = array<i32: 0>} : vector<4x4xi32>
    %126 = tpu.iota {dimensions = array<i32: 1>} : vector<4x4xi32>
    %127 = arith.cmpi eq, %125, %126 : vector<4x4xi32>
    %128 = arith.extui %127 : vector<4x4xi1> to vector<4x4xi32>
    %129 = arith.sitofp %128 : vector<4x4xi32> to vector<4x4xf32>
    %cst_35 = arith.constant 1.000000e+00 : f32
    %130 = vector.broadcast %cst_35 : f32 to vector<4x4xf32>
    %131 = arith.subf %130, %129 : vector<4x4xf32>
    %132 = vector.extract_strided_slice %124 {offsets = [0, 0], sizes = [4, 9], strides = [1, 1]} : vector<8x9xf32> to vector<4x9xf32>
    %cst_36 = arith.constant dense<0.000000e+00> : vector<4x4xf32>
    %133 = tpu.matmul %132, %132, %cst_36 {dimension_numbers = #tpu.dot_dimension_numbers<[1], [1], [0], [0], [0, 0, 1, 0], [], []>} : vector<4x9xf32>, vector<4x9xf32>, vector<4x4xf32> -> vector<4x4xf32>
    %134 = arith.mulf %132, %132 : vector<4x9xf32>
    %cst_37 = arith.constant dense<0.000000e+00> : vector<4xf32>
    %135 = vector.multi_reduction <add>, %134, %cst_37 [1] : vector<4x9xf32> to vector<4xf32>
    %136 = vector.shape_cast %135 : vector<4xf32> to vector<4x1xf32>
    %137 = vector.shape_cast %136 : vector<4x1xf32> to vector<1x4xf32>
    %138 = vector.broadcast %136 : vector<4x1xf32> to vector<4x4xf32>
    %139 = vector.broadcast %137 : vector<1x4xf32> to vector<4x4xf32>
    %140 = arith.addf %138, %139 : vector<4x4xf32>
    %cst_38 = arith.constant 2.000000e+00 : f32
    %141 = vector.broadcast %cst_38 : f32 to vector<4x4xf32>
    %142 = arith.mulf %141, %133 : vector<4x4xf32>
    %143 = arith.subf %140, %142 : vector<4x4xf32>
    %cst_39 = arith.constant 0.000000e+00 : f32
    %144 = vector.broadcast %cst_39 : f32 to vector<4x4xf32>
    %145 = arith.maximumf %143, %144 : vector<4x4xf32>
    %cst_40 = arith.constant 1.000000e-10 : f32
    %146 = vector.broadcast %cst_40 : f32 to vector<4x4xf32>
    %147 = arith.addf %145, %146 : vector<4x4xf32>
    %cst_41 = arith.constant 1.000000e+00 : f32
    %148 = vector.broadcast %cst_41 : f32 to vector<4x4xf32>
    %149 = arith.divf %148, %147 : vector<4x4xf32>
    %150 = arith.mulf %149, %131 : vector<4x4xf32>
    %cst_42 = arith.constant dense<0xFF800000> : vector<4xf32>
    %151 = vector.multi_reduction <maximumf>, %150, %cst_42 [1] : vector<4x4xf32> to vector<4xf32>
    %152 = vector.shape_cast %151 : vector<4xf32> to vector<4x1xf32>
    %153 = vector.broadcast %152 : vector<4x1xf32> to vector<4x4xf32>
    %154 = arith.divf %150, %153 : vector<4x4xf32>
    %155 = arith.mulf %154, %131 : vector<4x4xf32>
    %156 = arith.addf %155, %129 : vector<4x4xf32>
    %cst_43 = arith.constant 5.000000e-01 : f32
    %157 = vector.broadcast %cst_43 : f32 to vector<4x4xf32>
    %158 = arith.cmpf oge, %156, %157 : vector<4x4xf32>
    %cst_44 = arith.constant 0.000000e+00 : f32
    %cst_45 = arith.constant -1.000000e+30 : f32
    %159 = vector.broadcast %cst_44 : f32 to vector<4x4xf32>
    %160 = vector.broadcast %cst_45 : f32 to vector<4x4xf32>
    %161 = arith.select %158, %159, %160 : vector<4x4xi1>, vector<4x4xf32>
    %162 = vector.extract_strided_slice %124 {offsets = [4, 0], sizes = [4, 9], strides = [1, 1]} : vector<8x9xf32> to vector<4x9xf32>
    %cst_46 = arith.constant dense<0.000000e+00> : vector<4x4xf32>
    %163 = tpu.matmul %162, %162, %cst_46 {dimension_numbers = #tpu.dot_dimension_numbers<[1], [1], [0], [0], [0, 0, 1, 0], [], []>} : vector<4x9xf32>, vector<4x9xf32>, vector<4x4xf32> -> vector<4x4xf32>
    %164 = arith.mulf %162, %162 : vector<4x9xf32>
    %cst_47 = arith.constant dense<0.000000e+00> : vector<4xf32>
    %165 = vector.multi_reduction <add>, %164, %cst_47 [1] : vector<4x9xf32> to vector<4xf32>
    %166 = vector.shape_cast %165 : vector<4xf32> to vector<4x1xf32>
    %167 = vector.shape_cast %166 : vector<4x1xf32> to vector<1x4xf32>
    %168 = vector.broadcast %166 : vector<4x1xf32> to vector<4x4xf32>
    %169 = vector.broadcast %167 : vector<1x4xf32> to vector<4x4xf32>
    %170 = arith.addf %168, %169 : vector<4x4xf32>
    %cst_48 = arith.constant 2.000000e+00 : f32
    %171 = vector.broadcast %cst_48 : f32 to vector<4x4xf32>
    %172 = arith.mulf %171, %163 : vector<4x4xf32>
    %173 = arith.subf %170, %172 : vector<4x4xf32>
    %cst_49 = arith.constant 0.000000e+00 : f32
    %174 = vector.broadcast %cst_49 : f32 to vector<4x4xf32>
    %175 = arith.maximumf %173, %174 : vector<4x4xf32>
    %cst_50 = arith.constant 1.000000e-10 : f32
    %176 = vector.broadcast %cst_50 : f32 to vector<4x4xf32>
    %177 = arith.addf %175, %176 : vector<4x4xf32>
    %cst_51 = arith.constant 1.000000e+00 : f32
    %178 = vector.broadcast %cst_51 : f32 to vector<4x4xf32>
    %179 = arith.divf %178, %177 : vector<4x4xf32>
    %180 = arith.mulf %179, %131 : vector<4x4xf32>
    %cst_52 = arith.constant dense<0xFF800000> : vector<4xf32>
    %181 = vector.multi_reduction <maximumf>, %180, %cst_52 [1] : vector<4x4xf32> to vector<4xf32>
    %182 = vector.shape_cast %181 : vector<4xf32> to vector<4x1xf32>
    %183 = vector.broadcast %182 : vector<4x1xf32> to vector<4x4xf32>
    %184 = arith.divf %180, %183 : vector<4x4xf32>
    %185 = arith.mulf %184, %131 : vector<4x4xf32>
    %186 = arith.addf %185, %129 : vector<4x4xf32>
    %cst_53 = arith.constant 5.000000e-01 : f32
    %187 = vector.broadcast %cst_53 : f32 to vector<4x4xf32>
    %188 = arith.cmpf oge, %186, %187 : vector<4x4xf32>
    %cst_54 = arith.constant 0.000000e+00 : f32
    %cst_55 = arith.constant -1.000000e+30 : f32
    %189 = vector.broadcast %cst_54 : f32 to vector<4x4xf32>
    %190 = vector.broadcast %cst_55 : f32 to vector<4x4xf32>
    %191 = arith.select %188, %189, %190 : vector<4x4xi1>, vector<4x4xf32>
    %192 = arith.truncf %110 : vector<8x32xf32> to vector<8x32xbf16>
    %c0_56 = arith.constant 0 : index
    %c0_57 = arith.constant 0 : index
    %c0_58 = arith.constant 0 : index
    %193 = vector.load %arg3[%c0_56, %c0_57, %c0_58] : memref<1x64x224xbf16, #tpu.memory_space<vmem>>, vector<1x32x96xbf16>
    %194 = vector.shape_cast %193 : vector<1x32x96xbf16> to vector<32x96xbf16>
    %cst_59 = arith.constant dense<0.000000e+00> : vector<8x96xf32>
    %195 = tpu.matmul %192, %194, %cst_59 {dimension_numbers = #tpu.dot_dimension_numbers<[1], [0], [0], [1], [0, 0, 1, 1], [], []>} : vector<8x32xbf16>, vector<32x96xbf16>, vector<8x96xf32> -> vector<8x96xf32>
    %c6 = arith.constant 6 : index
    %c0_60 = arith.constant 0 : index
    %196 = vector.load %arg5[%c6, %c0_60] : memref<14x128xf32, #tpu.memory_space<vmem>>, vector<1x96xf32>
    %197 = vector.broadcast %196 : vector<1x96xf32> to vector<8x96xf32>
    %198 = arith.addf %195, %197 : vector<8x96xf32>
    %199 = vector.extract_strided_slice %198 {offsets = [0, 0], sizes = [8, 32], strides = [1, 1]} : vector<8x96xf32> to vector<8x32xf32>
    %200 = vector.extract_strided_slice %198 {offsets = [0, 32], sizes = [8, 32], strides = [1, 1]} : vector<8x96xf32> to vector<8x32xf32>
    %201 = vector.extract_strided_slice %198 {offsets = [0, 64], sizes = [8, 32], strides = [1, 1]} : vector<8x96xf32> to vector<8x32xf32>
    %202 = arith.truncf %199 : vector<8x32xf32> to vector<8x32xbf16>
    %203 = arith.truncf %200 : vector<8x32xf32> to vector<8x32xbf16>
    %204 = arith.truncf %201 : vector<8x32xf32> to vector<8x32xbf16>
    %205 = vector.extract_strided_slice %202 {offsets = [0, 0], sizes = [4, 8], strides = [1, 1]} : vector<8x32xbf16> to vector<4x8xbf16>
    %206 = vector.extract_strided_slice %203 {offsets = [0, 0], sizes = [4, 8], strides = [1, 1]} : vector<8x32xbf16> to vector<4x8xbf16>
    %207 = vector.extract_strided_slice %204 {offsets = [0, 0], sizes = [4, 8], strides = [1, 1]} : vector<8x32xbf16> to vector<4x8xbf16>
    %cst_61 = arith.constant dense<0.000000e+00> : vector<4x4xf32>
    %208 = tpu.matmul %205, %206, %cst_61 {dimension_numbers = #tpu.dot_dimension_numbers<[1], [1], [0], [0], [0, 0, 1, 0], [], []>} : vector<4x8xbf16>, vector<4x8xbf16>, vector<4x4xf32> -> vector<4x4xf32>
    %cst_62 = arith.constant 0.353553385 : f32
    %209 = vector.broadcast %cst_62 : f32 to vector<4x4xf32>
    %210 = arith.mulf %208, %209 : vector<4x4xf32>
    %211 = arith.addf %210, %161 : vector<4x4xf32>
    %cst_63 = arith.constant dense<0xFF800000> : vector<4xf32>
    %212 = vector.multi_reduction <maximumf>, %211, %cst_63 [1] : vector<4x4xf32> to vector<4xf32>
    %213 = vector.shape_cast %212 : vector<4xf32> to vector<4x1xf32>
    %214 = vector.broadcast %213 : vector<4x1xf32> to vector<4x4xf32>
    %215 = arith.subf %211, %214 : vector<4x4xf32>
    %216 = math.exp %215 : vector<4x4xf32>
    %cst_64 = arith.constant dense<0.000000e+00> : vector<4xf32>
    %217 = vector.multi_reduction <add>, %216, %cst_64 [1] : vector<4x4xf32> to vector<4xf32>
    %218 = vector.shape_cast %217 : vector<4xf32> to vector<4x1xf32>
    %219 = tpu.reciprocal %218 {approx = true} : vector<4x1xf32> -> vector<4x1xf32>
    %220 = vector.broadcast %219 : vector<4x1xf32> to vector<4x4xf32>
    %221 = arith.mulf %216, %220 : vector<4x4xf32>
    %222 = arith.truncf %221 : vector<4x4xf32> to vector<4x4xbf16>
    %cst_65 = arith.constant dense<0.000000e+00> : vector<4x8xf32>
    %223 = tpu.matmul %222, %207, %cst_65 {dimension_numbers = #tpu.dot_dimension_numbers<[1], [0], [0], [1], [0, 0, 1, 1], [], []>} : vector<4x4xbf16>, vector<4x8xbf16>, vector<4x8xf32> -> vector<4x8xf32>
    %224 = vector.extract_strided_slice %202 {offsets = [0, 8], sizes = [4, 8], strides = [1, 1]} : vector<8x32xbf16> to vector<4x8xbf16>
    %225 = vector.extract_strided_slice %203 {offsets = [0, 8], sizes = [4, 8], strides = [1, 1]} : vector<8x32xbf16> to vector<4x8xbf16>
    %226 = vector.extract_strided_slice %204 {offsets = [0, 8], sizes = [4, 8], strides = [1, 1]} : vector<8x32xbf16> to vector<4x8xbf16>
    %cst_66 = arith.constant dense<0.000000e+00> : vector<4x4xf32>
    %227 = tpu.matmul %224, %225, %cst_66 {dimension_numbers = #tpu.dot_dimension_numbers<[1], [1], [0], [0], [0, 0, 1, 0], [], []>} : vector<4x8xbf16>, vector<4x8xbf16>, vector<4x4xf32> -> vector<4x4xf32>
    %cst_67 = arith.constant 0.353553385 : f32
    %228 = vector.broadcast %cst_67 : f32 to vector<4x4xf32>
    %229 = arith.mulf %227, %228 : vector<4x4xf32>
    %230 = arith.addf %229, %161 : vector<4x4xf32>
    %cst_68 = arith.constant dense<0xFF800000> : vector<4xf32>
    %231 = vector.multi_reduction <maximumf>, %230, %cst_68 [1] : vector<4x4xf32> to vector<4xf32>
    %232 = vector.shape_cast %231 : vector<4xf32> to vector<4x1xf32>
    %233 = vector.broadcast %232 : vector<4x1xf32> to vector<4x4xf32>
    %234 = arith.subf %230, %233 : vector<4x4xf32>
    %235 = math.exp %234 : vector<4x4xf32>
    %cst_69 = arith.constant dense<0.000000e+00> : vector<4xf32>
    %236 = vector.multi_reduction <add>, %235, %cst_69 [1] : vector<4x4xf32> to vector<4xf32>
    %237 = vector.shape_cast %236 : vector<4xf32> to vector<4x1xf32>
    %238 = tpu.reciprocal %237 {approx = true} : vector<4x1xf32> -> vector<4x1xf32>
    %239 = vector.broadcast %238 : vector<4x1xf32> to vector<4x4xf32>
    %240 = arith.mulf %235, %239 : vector<4x4xf32>
    %241 = arith.truncf %240 : vector<4x4xf32> to vector<4x4xbf16>
    %cst_70 = arith.constant dense<0.000000e+00> : vector<4x8xf32>
    %242 = tpu.matmul %241, %226, %cst_70 {dimension_numbers = #tpu.dot_dimension_numbers<[1], [0], [0], [1], [0, 0, 1, 1], [], []>} : vector<4x4xbf16>, vector<4x8xbf16>, vector<4x8xf32> -> vector<4x8xf32>
    %243 = vector.extract_strided_slice %202 {offsets = [0, 16], sizes = [4, 8], strides = [1, 1]} : vector<8x32xbf16> to vector<4x8xbf16>
    %244 = vector.extract_strided_slice %203 {offsets = [0, 16], sizes = [4, 8], strides = [1, 1]} : vector<8x32xbf16> to vector<4x8xbf16>
    %245 = vector.extract_strided_slice %204 {offsets = [0, 16], sizes = [4, 8], strides = [1, 1]} : vector<8x32xbf16> to vector<4x8xbf16>
    %cst_71 = arith.constant dense<0.000000e+00> : vector<4x4xf32>
    %246 = tpu.matmul %243, %244, %cst_71 {dimension_numbers = #tpu.dot_dimension_numbers<[1], [1], [0], [0], [0, 0, 1, 0], [], []>} : vector<4x8xbf16>, vector<4x8xbf16>, vector<4x4xf32> -> vector<4x4xf32>
    %cst_72 = arith.constant 0.353553385 : f32
    %247 = vector.broadcast %cst_72 : f32 to vector<4x4xf32>
    %248 = arith.mulf %246, %247 : vector<4x4xf32>
    %249 = arith.addf %248, %161 : vector<4x4xf32>
    %cst_73 = arith.constant dense<0xFF800000> : vector<4xf32>
    %250 = vector.multi_reduction <maximumf>, %249, %cst_73 [1] : vector<4x4xf32> to vector<4xf32>
    %251 = vector.shape_cast %250 : vector<4xf32> to vector<4x1xf32>
    %252 = vector.broadcast %251 : vector<4x1xf32> to vector<4x4xf32>
    %253 = arith.subf %249, %252 : vector<4x4xf32>
    %254 = math.exp %253 : vector<4x4xf32>
    %cst_74 = arith.constant dense<0.000000e+00> : vector<4xf32>
    %255 = vector.multi_reduction <add>, %254, %cst_74 [1] : vector<4x4xf32> to vector<4xf32>
    %256 = vector.shape_cast %255 : vector<4xf32> to vector<4x1xf32>
    %257 = tpu.reciprocal %256 {approx = true} : vector<4x1xf32> -> vector<4x1xf32>
    %258 = vector.broadcast %257 : vector<4x1xf32> to vector<4x4xf32>
    %259 = arith.mulf %254, %258 : vector<4x4xf32>
    %260 = arith.truncf %259 : vector<4x4xf32> to vector<4x4xbf16>
    %cst_75 = arith.constant dense<0.000000e+00> : vector<4x8xf32>
    %261 = tpu.matmul %260, %245, %cst_75 {dimension_numbers = #tpu.dot_dimension_numbers<[1], [0], [0], [1], [0, 0, 1, 1], [], []>} : vector<4x4xbf16>, vector<4x8xbf16>, vector<4x8xf32> -> vector<4x8xf32>
    %262 = vector.extract_strided_slice %202 {offsets = [0, 24], sizes = [4, 8], strides = [1, 1]} : vector<8x32xbf16> to vector<4x8xbf16>
    %263 = vector.extract_strided_slice %203 {offsets = [0, 24], sizes = [4, 8], strides = [1, 1]} : vector<8x32xbf16> to vector<4x8xbf16>
    %264 = vector.extract_strided_slice %204 {offsets = [0, 24], sizes = [4, 8], strides = [1, 1]} : vector<8x32xbf16> to vector<4x8xbf16>
    %cst_76 = arith.constant dense<0.000000e+00> : vector<4x4xf32>
    %265 = tpu.matmul %262, %263, %cst_76 {dimension_numbers = #tpu.dot_dimension_numbers<[1], [1], [0], [0], [0, 0, 1, 0], [], []>} : vector<4x8xbf16>, vector<4x8xbf16>, vector<4x4xf32> -> vector<4x4xf32>
    %cst_77 = arith.constant 0.353553385 : f32
    %266 = vector.broadcast %cst_77 : f32 to vector<4x4xf32>
    %267 = arith.mulf %265, %266 : vector<4x4xf32>
    %268 = arith.addf %267, %161 : vector<4x4xf32>
    %cst_78 = arith.constant dense<0xFF800000> : vector<4xf32>
    %269 = vector.multi_reduction <maximumf>, %268, %cst_78 [1] : vector<4x4xf32> to vector<4xf32>
    %270 = vector.shape_cast %269 : vector<4xf32> to vector<4x1xf32>
    %271 = vector.broadcast %270 : vector<4x1xf32> to vector<4x4xf32>
    %272 = arith.subf %268, %271 : vector<4x4xf32>
    %273 = math.exp %272 : vector<4x4xf32>
    %cst_79 = arith.constant dense<0.000000e+00> : vector<4xf32>
    %274 = vector.multi_reduction <add>, %273, %cst_79 [1] : vector<4x4xf32> to vector<4xf32>
    %275 = vector.shape_cast %274 : vector<4xf32> to vector<4x1xf32>
    %276 = tpu.reciprocal %275 {approx = true} : vector<4x1xf32> -> vector<4x1xf32>
    %277 = vector.broadcast %276 : vector<4x1xf32> to vector<4x4xf32>
    %278 = arith.mulf %273, %277 : vector<4x4xf32>
    %279 = arith.truncf %278 : vector<4x4xf32> to vector<4x4xbf16>
    %cst_80 = arith.constant dense<0.000000e+00> : vector<4x8xf32>
    %280 = tpu.matmul %279, %264, %cst_80 {dimension_numbers = #tpu.dot_dimension_numbers<[1], [0], [0], [1], [0, 0, 1, 1], [], []>} : vector<4x4xbf16>, vector<4x8xbf16>, vector<4x8xf32> -> vector<4x8xf32>
    %281 = tpu.concatenate %223, %242, %261, %280 in 1 : vector<4x8xf32>, vector<4x8xf32>, vector<4x8xf32>, vector<4x8xf32> -> vector<4x32xf32>
    %282 = vector.extract_strided_slice %202 {offsets = [4, 0], sizes = [4, 8], strides = [1, 1]} : vector<8x32xbf16> to vector<4x8xbf16>
    %283 = vector.extract_strided_slice %203 {offsets = [4, 0], sizes = [4, 8], strides = [1, 1]} : vector<8x32xbf16> to vector<4x8xbf16>
    %284 = vector.extract_strided_slice %204 {offsets = [4, 0], sizes = [4, 8], strides = [1, 1]} : vector<8x32xbf16> to vector<4x8xbf16>
    %cst_81 = arith.constant dense<0.000000e+00> : vector<4x4xf32>
    %285 = tpu.matmul %282, %283, %cst_81 {dimension_numbers = #tpu.dot_dimension_numbers<[1], [1], [0], [0], [0, 0, 1, 0], [], []>} : vector<4x8xbf16>, vector<4x8xbf16>, vector<4x4xf32> -> vector<4x4xf32>
    %cst_82 = arith.constant 0.353553385 : f32
    %286 = vector.broadcast %cst_82 : f32 to vector<4x4xf32>
    %287 = arith.mulf %285, %286 : vector<4x4xf32>
    %288 = arith.addf %287, %191 : vector<4x4xf32>
    %cst_83 = arith.constant dense<0xFF800000> : vector<4xf32>
    %289 = vector.multi_reduction <maximumf>, %288, %cst_83 [1] : vector<4x4xf32> to vector<4xf32>
    %290 = vector.shape_cast %289 : vector<4xf32> to vector<4x1xf32>
    %291 = vector.broadcast %290 : vector<4x1xf32> to vector<4x4xf32>
    %292 = arith.subf %288, %291 : vector<4x4xf32>
    %293 = math.exp %292 : vector<4x4xf32>
    %cst_84 = arith.constant dense<0.000000e+00> : vector<4xf32>
    %294 = vector.multi_reduction <add>, %293, %cst_84 [1] : vector<4x4xf32> to vector<4xf32>
    %295 = vector.shape_cast %294 : vector<4xf32> to vector<4x1xf32>
    %296 = tpu.reciprocal %295 {approx = true} : vector<4x1xf32> -> vector<4x1xf32>
    %297 = vector.broadcast %296 : vector<4x1xf32> to vector<4x4xf32>
    %298 = arith.mulf %293, %297 : vector<4x4xf32>
    %299 = arith.truncf %298 : vector<4x4xf32> to vector<4x4xbf16>
    %cst_85 = arith.constant dense<0.000000e+00> : vector<4x8xf32>
    %300 = tpu.matmul %299, %284, %cst_85 {dimension_numbers = #tpu.dot_dimension_numbers<[1], [0], [0], [1], [0, 0, 1, 1], [], []>} : vector<4x4xbf16>, vector<4x8xbf16>, vector<4x8xf32> -> vector<4x8xf32>
    %301 = vector.extract_strided_slice %202 {offsets = [4, 8], sizes = [4, 8], strides = [1, 1]} : vector<8x32xbf16> to vector<4x8xbf16>
    %302 = vector.extract_strided_slice %203 {offsets = [4, 8], sizes = [4, 8], strides = [1, 1]} : vector<8x32xbf16> to vector<4x8xbf16>
    %303 = vector.extract_strided_slice %204 {offsets = [4, 8], sizes = [4, 8], strides = [1, 1]} : vector<8x32xbf16> to vector<4x8xbf16>
    %cst_86 = arith.constant dense<0.000000e+00> : vector<4x4xf32>
    %304 = tpu.matmul %301, %302, %cst_86 {dimension_numbers = #tpu.dot_dimension_numbers<[1], [1], [0], [0], [0, 0, 1, 0], [], []>} : vector<4x8xbf16>, vector<4x8xbf16>, vector<4x4xf32> -> vector<4x4xf32>
    %cst_87 = arith.constant 0.353553385 : f32
    %305 = vector.broadcast %cst_87 : f32 to vector<4x4xf32>
    %306 = arith.mulf %304, %305 : vector<4x4xf32>
    %307 = arith.addf %306, %191 : vector<4x4xf32>
    %cst_88 = arith.constant dense<0xFF800000> : vector<4xf32>
    %308 = vector.multi_reduction <maximumf>, %307, %cst_88 [1] : vector<4x4xf32> to vector<4xf32>
    %309 = vector.shape_cast %308 : vector<4xf32> to vector<4x1xf32>
    %310 = vector.broadcast %309 : vector<4x1xf32> to vector<4x4xf32>
    %311 = arith.subf %307, %310 : vector<4x4xf32>
    %312 = math.exp %311 : vector<4x4xf32>
    %cst_89 = arith.constant dense<0.000000e+00> : vector<4xf32>
    %313 = vector.multi_reduction <add>, %312, %cst_89 [1] : vector<4x4xf32> to vector<4xf32>
    %314 = vector.shape_cast %313 : vector<4xf32> to vector<4x1xf32>
    %315 = tpu.reciprocal %314 {approx = true} : vector<4x1xf32> -> vector<4x1xf32>
    %316 = vector.broadcast %315 : vector<4x1xf32> to vector<4x4xf32>
    %317 = arith.mulf %312, %316 : vector<4x4xf32>
    %318 = arith.truncf %317 : vector<4x4xf32> to vector<4x4xbf16>
    %cst_90 = arith.constant dense<0.000000e+00> : vector<4x8xf32>
    %319 = tpu.matmul %318, %303, %cst_90 {dimension_numbers = #tpu.dot_dimension_numbers<[1], [0], [0], [1], [0, 0, 1, 1], [], []>} : vector<4x4xbf16>, vector<4x8xbf16>, vector<4x8xf32> -> vector<4x8xf32>
    %320 = vector.extract_strided_slice %202 {offsets = [4, 16], sizes = [4, 8], strides = [1, 1]} : vector<8x32xbf16> to vector<4x8xbf16>
    %321 = vector.extract_strided_slice %203 {offsets = [4, 16], sizes = [4, 8], strides = [1, 1]} : vector<8x32xbf16> to vector<4x8xbf16>
    %322 = vector.extract_strided_slice %204 {offsets = [4, 16], sizes = [4, 8], strides = [1, 1]} : vector<8x32xbf16> to vector<4x8xbf16>
    %cst_91 = arith.constant dense<0.000000e+00> : vector<4x4xf32>
    %323 = tpu.matmul %320, %321, %cst_91 {dimension_numbers = #tpu.dot_dimension_numbers<[1], [1], [0], [0], [0, 0, 1, 0], [], []>} : vector<4x8xbf16>, vector<4x8xbf16>, vector<4x4xf32> -> vector<4x4xf32>
    %cst_92 = arith.constant 0.353553385 : f32
    %324 = vector.broadcast %cst_92 : f32 to vector<4x4xf32>
    %325 = arith.mulf %323, %324 : vector<4x4xf32>
    %326 = arith.addf %325, %191 : vector<4x4xf32>
    %cst_93 = arith.constant dense<0xFF800000> : vector<4xf32>
    %327 = vector.multi_reduction <maximumf>, %326, %cst_93 [1] : vector<4x4xf32> to vector<4xf32>
    %328 = vector.shape_cast %327 : vector<4xf32> to vector<4x1xf32>
    %329 = vector.broadcast %328 : vector<4x1xf32> to vector<4x4xf32>
    %330 = arith.subf %326, %329 : vector<4x4xf32>
    %331 = math.exp %330 : vector<4x4xf32>
    %cst_94 = arith.constant dense<0.000000e+00> : vector<4xf32>
    %332 = vector.multi_reduction <add>, %331, %cst_94 [1] : vector<4x4xf32> to vector<4xf32>
    %333 = vector.shape_cast %332 : vector<4xf32> to vector<4x1xf32>
    %334 = tpu.reciprocal %333 {approx = true} : vector<4x1xf32> -> vector<4x1xf32>
    %335 = vector.broadcast %334 : vector<4x1xf32> to vector<4x4xf32>
    %336 = arith.mulf %331, %335 : vector<4x4xf32>
    %337 = arith.truncf %336 : vector<4x4xf32> to vector<4x4xbf16>
    %cst_95 = arith.constant dense<0.000000e+00> : vector<4x8xf32>
    %338 = tpu.matmul %337, %322, %cst_95 {dimension_numbers = #tpu.dot_dimension_numbers<[1], [0], [0], [1], [0, 0, 1, 1], [], []>} : vector<4x4xbf16>, vector<4x8xbf16>, vector<4x8xf32> -> vector<4x8xf32>
    %339 = vector.extract_strided_slice %202 {offsets = [4, 24], sizes = [4, 8], strides = [1, 1]} : vector<8x32xbf16> to vector<4x8xbf16>
    %340 = vector.extract_strided_slice %203 {offsets = [4, 24], sizes = [4, 8], strides = [1, 1]} : vector<8x32xbf16> to vector<4x8xbf16>
    %341 = vector.extract_strided_slice %204 {offsets = [4, 24], sizes = [4, 8], strides = [1, 1]} : vector<8x32xbf16> to vector<4x8xbf16>
    %cst_96 = arith.constant dense<0.000000e+00> : vector<4x4xf32>
    %342 = tpu.matmul %339, %340, %cst_96 {dimension_numbers = #tpu.dot_dimension_numbers<[1], [1], [0], [0], [0, 0, 1, 0], [], []>} : vector<4x8xbf16>, vector<4x8xbf16>, vector<4x4xf32> -> vector<4x4xf32>
    %cst_97 = arith.constant 0.353553385 : f32
    %343 = vector.broadcast %cst_97 : f32 to vector<4x4xf32>
    %344 = arith.mulf %342, %343 : vector<4x4xf32>
    %345 = arith.addf %344, %191 : vector<4x4xf32>
    %cst_98 = arith.constant dense<0xFF800000> : vector<4xf32>
    %346 = vector.multi_reduction <maximumf>, %345, %cst_98 [1] : vector<4x4xf32> to vector<4xf32>
    %347 = vector.shape_cast %346 : vector<4xf32> to vector<4x1xf32>
    %348 = vector.broadcast %347 : vector<4x1xf32> to vector<4x4xf32>
    %349 = arith.subf %345, %348 : vector<4x4xf32>
    %350 = math.exp %349 : vector<4x4xf32>
    %cst_99 = arith.constant dense<0.000000e+00> : vector<4xf32>
    %351 = vector.multi_reduction <add>, %350, %cst_99 [1] : vector<4x4xf32> to vector<4xf32>
    %352 = vector.shape_cast %351 : vector<4xf32> to vector<4x1xf32>
    %353 = tpu.reciprocal %352 {approx = true} : vector<4x1xf32> -> vector<4x1xf32>
    %354 = vector.broadcast %353 : vector<4x1xf32> to vector<4x4xf32>
    %355 = arith.mulf %350, %354 : vector<4x4xf32>
    %356 = arith.truncf %355 : vector<4x4xf32> to vector<4x4xbf16>
    %cst_100 = arith.constant dense<0.000000e+00> : vector<4x8xf32>
    %357 = tpu.matmul %356, %341, %cst_100 {dimension_numbers = #tpu.dot_dimension_numbers<[1], [0], [0], [1], [0, 0, 1, 1], [], []>} : vector<4x4xbf16>, vector<4x8xbf16>, vector<4x8xf32> -> vector<4x8xf32>
    %358 = tpu.concatenate %300, %319, %338, %357 in 1 : vector<4x8xf32>, vector<4x8xf32>, vector<4x8xf32>, vector<4x8xf32> -> vector<4x32xf32>
    %359 = tpu.concatenate %281, %358 in 0 : vector<4x32xf32>, vector<4x32xf32> -> vector<8x32xf32>
    %360 = arith.truncf %359 : vector<8x32xf32> to vector<8x32xbf16>
    %c0_101 = arith.constant 0 : index
    %c0_102 = arith.constant 0 : index
    %c96 = arith.constant 96 : index
    %361 = vector.load %arg3[%c0_101, %c0_102, %c96] : memref<1x64x224xbf16, #tpu.memory_space<vmem>>, vector<1x32x32xbf16>
    %362 = vector.shape_cast %361 : vector<1x32x32xbf16> to vector<32x32xbf16>
    %cst_103 = arith.constant dense<0.000000e+00> : vector<8x32xf32>
    %363 = tpu.matmul %360, %362, %cst_103 {dimension_numbers = #tpu.dot_dimension_numbers<[1], [0], [0], [1], [0, 0, 1, 1], [], []>} : vector<8x32xbf16>, vector<32x32xbf16>, vector<8x32xf32> -> vector<8x32xf32>
    %c7 = arith.constant 7 : index
    %c0_104 = arith.constant 0 : index
    %364 = vector.load %arg5[%c7, %c0_104] : memref<14x128xf32, #tpu.memory_space<vmem>>, vector<1x32xf32>
    %365 = vector.broadcast %364 : vector<1x32xf32> to vector<8x32xf32>
    %366 = arith.addf %363, %365 : vector<8x32xf32>
    %367 = arith.addf %110, %366 : vector<8x32xf32>
    %c10 = arith.constant 10 : index
    %c0_105 = arith.constant 0 : index
    %368 = vector.load %arg5[%c10, %c0_105] : memref<14x128xf32, #tpu.memory_space<vmem>>, vector<1x32xf32>
    %c11 = arith.constant 11 : index
    %c0_106 = arith.constant 0 : index
    %369 = vector.load %arg5[%c11, %c0_106] : memref<14x128xf32, #tpu.memory_space<vmem>>, vector<1x32xf32>
    %cst_107 = arith.constant dense<0.000000e+00> : vector<8xf32>
    %370 = vector.multi_reduction <add>, %367, %cst_107 [1] : vector<8x32xf32> to vector<8xf32>
    %371 = vector.shape_cast %370 : vector<8xf32> to vector<8x1xf32>
    %cst_108 = arith.constant 3.200000e+01 : f32
    %372 = vector.broadcast %cst_108 : f32 to vector<8x1xf32>
    %373 = arith.divf %371, %372 : vector<8x1xf32>
    %374 = vector.broadcast %373 : vector<8x1xf32> to vector<8x32xf32>
    %375 = arith.subf %367, %374 : vector<8x32xf32>
    %376 = arith.mulf %375, %375 : vector<8x32xf32>
    %cst_109 = arith.constant dense<0.000000e+00> : vector<8xf32>
    %377 = vector.multi_reduction <add>, %376, %cst_109 [1] : vector<8x32xf32> to vector<8xf32>
    %378 = vector.shape_cast %377 : vector<8xf32> to vector<8x1xf32>
    %cst_110 = arith.constant 3.200000e+01 : f32
    %379 = vector.broadcast %cst_110 : f32 to vector<8x1xf32>
    %380 = arith.divf %378, %379 : vector<8x1xf32>
    %381 = vector.broadcast %373 : vector<8x1xf32> to vector<8x32xf32>
    %382 = arith.subf %367, %381 : vector<8x32xf32>
    %cst_111 = arith.constant 9.99999974E-6 : f32
    %383 = vector.broadcast %cst_111 : f32 to vector<8x1xf32>
    %384 = arith.addf %380, %383 : vector<8x1xf32>
    %385 = math.rsqrt %384 : vector<8x1xf32>
    %386 = vector.broadcast %385 : vector<8x1xf32> to vector<8x32xf32>
    %387 = arith.mulf %382, %386 : vector<8x32xf32>
    %388 = vector.broadcast %368 : vector<1x32xf32> to vector<8x32xf32>
    %389 = arith.mulf %387, %388 : vector<8x32xf32>
    %390 = vector.broadcast %369 : vector<1x32xf32> to vector<8x32xf32>
    %391 = arith.addf %389, %390 : vector<8x32xf32>
    %392 = arith.truncf %391 : vector<8x32xf32> to vector<8x32xbf16>
    %c0_112 = arith.constant 0 : index
    %c0_113 = arith.constant 0 : index
    %c128 = arith.constant 128 : index
    %393 = vector.load %arg3[%c0_112, %c0_113, %c128] : memref<1x64x224xbf16, #tpu.memory_space<vmem>>, vector<1x32x64xbf16>
    %394 = vector.shape_cast %393 : vector<1x32x64xbf16> to vector<32x64xbf16>
    %cst_114 = arith.constant dense<0.000000e+00> : vector<8x64xf32>
    %395 = tpu.matmul %392, %394, %cst_114 {dimension_numbers = #tpu.dot_dimension_numbers<[1], [0], [0], [1], [0, 0, 1, 1], [], []>} : vector<8x32xbf16>, vector<32x64xbf16>, vector<8x64xf32> -> vector<8x64xf32>
    %c8 = arith.constant 8 : index
    %c0_115 = arith.constant 0 : index
    %396 = vector.load %arg5[%c8, %c0_115] : memref<14x128xf32, #tpu.memory_space<vmem>>, vector<1x64xf32>
    %397 = vector.broadcast %396 : vector<1x64xf32> to vector<8x64xf32>
    %398 = arith.addf %395, %397 : vector<8x64xf32>
    %399 = arith.mulf %398, %398 : vector<8x64xf32>
    %400 = arith.mulf %398, %399 : vector<8x64xf32>
    %cst_116 = arith.constant 4.471500e-02 : f32
    %401 = vector.broadcast %cst_116 : f32 to vector<8x64xf32>
    %402 = arith.mulf %401, %400 : vector<8x64xf32>
    %403 = arith.addf %398, %402 : vector<8x64xf32>
    %cst_117 = arith.constant 0.797884583 : f32
    %404 = vector.broadcast %cst_117 : f32 to vector<8x64xf32>
    %405 = arith.mulf %404, %403 : vector<8x64xf32>
    %406 = math.tanh %405 : vector<8x64xf32>
    %cst_118 = arith.constant 1.000000e+00 : f32
    %407 = vector.broadcast %cst_118 : f32 to vector<8x64xf32>
    %408 = arith.addf %407, %406 : vector<8x64xf32>
    %cst_119 = arith.constant 5.000000e-01 : f32
    %409 = vector.broadcast %cst_119 : f32 to vector<8x64xf32>
    %410 = arith.mulf %409, %408 : vector<8x64xf32>
    %411 = arith.mulf %398, %410 : vector<8x64xf32>
    %412 = arith.truncf %411 : vector<8x64xf32> to vector<8x64xbf16>
    %c0_120 = arith.constant 0 : index
    %c0_121 = arith.constant 0 : index
    %c192 = arith.constant 192 : index
    %413 = vector.load %arg3[%c0_120, %c0_121, %c192] : memref<1x64x224xbf16, #tpu.memory_space<vmem>>, vector<1x64x32xbf16>
    %414 = vector.shape_cast %413 : vector<1x64x32xbf16> to vector<64x32xbf16>
    %cst_122 = arith.constant dense<0.000000e+00> : vector<8x32xf32>
    %415 = tpu.matmul %412, %414, %cst_122 {dimension_numbers = #tpu.dot_dimension_numbers<[1], [0], [0], [1], [0, 0, 1, 1], [], []>} : vector<8x64xbf16>, vector<64x32xbf16>, vector<8x32xf32> -> vector<8x32xf32>
    %c9 = arith.constant 9 : index
    %c0_123 = arith.constant 0 : index
    %416 = vector.load %arg5[%c9, %c0_123] : memref<14x128xf32, #tpu.memory_space<vmem>>, vector<1x32xf32>
    %417 = vector.broadcast %416 : vector<1x32xf32> to vector<8x32xf32>
    %418 = arith.addf %415, %417 : vector<8x32xf32>
    %419 = arith.addf %391, %418 : vector<8x32xf32>
    %c12 = arith.constant 12 : index
    %c0_124 = arith.constant 0 : index
    %420 = vector.load %arg5[%c12, %c0_124] : memref<14x128xf32, #tpu.memory_space<vmem>>, vector<1x32xf32>
    %c13 = arith.constant 13 : index
    %c0_125 = arith.constant 0 : index
    %421 = vector.load %arg5[%c13, %c0_125] : memref<14x128xf32, #tpu.memory_space<vmem>>, vector<1x32xf32>
    %cst_126 = arith.constant dense<0.000000e+00> : vector<8xf32>
    %422 = vector.multi_reduction <add>, %419, %cst_126 [1] : vector<8x32xf32> to vector<8xf32>
    %423 = vector.shape_cast %422 : vector<8xf32> to vector<8x1xf32>
    %cst_127 = arith.constant 3.200000e+01 : f32
    %424 = vector.broadcast %cst_127 : f32 to vector<8x1xf32>
    %425 = arith.divf %423, %424 : vector<8x1xf32>
    %426 = vector.broadcast %425 : vector<8x1xf32> to vector<8x32xf32>
    %427 = arith.subf %419, %426 : vector<8x32xf32>
    %428 = arith.mulf %427, %427 : vector<8x32xf32>
    %cst_128 = arith.constant dense<0.000000e+00> : vector<8xf32>
    %429 = vector.multi_reduction <add>, %428, %cst_128 [1] : vector<8x32xf32> to vector<8xf32>
    %430 = vector.shape_cast %429 : vector<8xf32> to vector<8x1xf32>
    %cst_129 = arith.constant 3.200000e+01 : f32
    %431 = vector.broadcast %cst_129 : f32 to vector<8x1xf32>
    %432 = arith.divf %430, %431 : vector<8x1xf32>
    %433 = vector.broadcast %425 : vector<8x1xf32> to vector<8x32xf32>
    %434 = arith.subf %419, %433 : vector<8x32xf32>
    %cst_130 = arith.constant 9.99999974E-6 : f32
    %435 = vector.broadcast %cst_130 : f32 to vector<8x1xf32>
    %436 = arith.addf %432, %435 : vector<8x1xf32>
    %437 = math.rsqrt %436 : vector<8x1xf32>
    %438 = vector.broadcast %437 : vector<8x1xf32> to vector<8x32xf32>
    %439 = arith.mulf %434, %438 : vector<8x32xf32>
    %440 = vector.broadcast %420 : vector<1x32xf32> to vector<8x32xf32>
    %441 = arith.mulf %439, %440 : vector<8x32xf32>
    %442 = vector.broadcast %421 : vector<1x32xf32> to vector<8x32xf32>
    %443 = arith.addf %441, %442 : vector<8x32xf32>
    %c3 = arith.constant 3 : index
    %c0_131 = arith.constant 0 : index
    %444 = vector.load %arg5[%c3, %c0_131] : memref<14x128xf32, #tpu.memory_space<vmem>>, vector<1x32xf32>
    %c4 = arith.constant 4 : index
    %c0_132 = arith.constant 0 : index
    %445 = vector.load %arg5[%c4, %c0_132] : memref<14x128xf32, #tpu.memory_space<vmem>>, vector<1x32xf32>
    %cst_133 = arith.constant dense<0.000000e+00> : vector<8xf32>
    %446 = vector.multi_reduction <add>, %443, %cst_133 [1] : vector<8x32xf32> to vector<8xf32>
    %447 = vector.shape_cast %446 : vector<8xf32> to vector<8x1xf32>
    %cst_134 = arith.constant 3.200000e+01 : f32
    %448 = vector.broadcast %cst_134 : f32 to vector<8x1xf32>
    %449 = arith.divf %447, %448 : vector<8x1xf32>
    %450 = vector.broadcast %449 : vector<8x1xf32> to vector<8x32xf32>
    %451 = arith.subf %443, %450 : vector<8x32xf32>
    %452 = arith.mulf %451, %451 : vector<8x32xf32>
    %cst_135 = arith.constant dense<0.000000e+00> : vector<8xf32>
    %453 = vector.multi_reduction <add>, %452, %cst_135 [1] : vector<8x32xf32> to vector<8xf32>
    %454 = vector.shape_cast %453 : vector<8xf32> to vector<8x1xf32>
    %cst_136 = arith.constant 3.200000e+01 : f32
    %455 = vector.broadcast %cst_136 : f32 to vector<8x1xf32>
    %456 = arith.divf %454, %455 : vector<8x1xf32>
    %457 = vector.broadcast %449 : vector<8x1xf32> to vector<8x32xf32>
    %458 = arith.subf %443, %457 : vector<8x32xf32>
    %cst_137 = arith.constant 9.99999974E-6 : f32
    %459 = vector.broadcast %cst_137 : f32 to vector<8x1xf32>
    %460 = arith.addf %456, %459 : vector<8x1xf32>
    %461 = math.rsqrt %460 : vector<8x1xf32>
    %462 = vector.broadcast %461 : vector<8x1xf32> to vector<8x32xf32>
    %463 = arith.mulf %458, %462 : vector<8x32xf32>
    %464 = vector.broadcast %444 : vector<1x32xf32> to vector<8x32xf32>
    %465 = arith.mulf %463, %464 : vector<8x32xf32>
    %466 = vector.broadcast %445 : vector<1x32xf32> to vector<8x32xf32>
    %467 = arith.addf %465, %466 : vector<8x32xf32>
    %468 = arith.truncf %467 : vector<8x32xf32> to vector<8x32xbf16>
    %c0_138 = arith.constant 0 : index
    %c0_139 = arith.constant 0 : index
    %469 = vector.load %arg4[%c0_138, %c0_139] : memref<32x8xbf16, #tpu.memory_space<vmem>>, vector<32x8xbf16>
    %cst_140 = arith.constant dense<0.000000e+00> : vector<8x8xf32>
    %470 = tpu.matmul %468, %469, %cst_140 {dimension_numbers = #tpu.dot_dimension_numbers<[1], [0], [0], [1], [0, 0, 1, 1], [], []>} : vector<8x32xbf16>, vector<32x8xbf16>, vector<8x8xf32> -> vector<8x8xf32>
    %c5 = arith.constant 5 : index
    %c0_141 = arith.constant 0 : index
    %471 = vector.load %arg5[%c5, %c0_141] : memref<14x128xf32, #tpu.memory_space<vmem>>, vector<1x8xf32>
    %472 = vector.broadcast %471 : vector<1x8xf32> to vector<8x8xf32>
    %473 = arith.addf %470, %472 : vector<8x8xf32>
    %474 = vector.broadcast %20 : vector<1x1xf32> to vector<8x8xf32>
    %475 = arith.subf %473, %474 : vector<8x8xf32>
    %cst_142 = arith.constant 1.000000e-10 : f32
    %476 = vector.broadcast %cst_142 : f32 to vector<1x1xf32>
    %477 = arith.addf %19, %476 : vector<1x1xf32>
    %478 = vector.broadcast %477 : vector<1x1xf32> to vector<8x8xf32>
    %479 = arith.divf %475, %478 : vector<8x8xf32>
    %480 = vector.broadcast %14 : vector<8x1xf32> to vector<8x8xf32>
    %481 = arith.mulf %479, %480 : vector<8x8xf32>
    %482 = vector.broadcast %4 : vector<8x1xf32> to vector<8x8xf32>
    %483 = arith.addf %481, %482 : vector<8x8xf32>
    %c0_143 = arith.constant 0 : index
    %c0_144 = arith.constant 0 : index
    %484 = vector.load %arg6[%c0_143, %c0_144] : memref<8x8xf32, #tpu.memory_space<vmem>>, vector<8x8xf32>
    tpu.vector_store %arg6[%c0_143, %c0_144], %483 {strides = array<i32>} : memref<8x8xf32, #tpu.memory_space<vmem>>, vector<8x8xf32>,
    return
  }
}

</mosaic_0001>

<llo_original>
// kernel: _lambda_.1
$region0: #{_lambda_.1}
  #allocation0 [shape = 'u32[]', space=smem, size = 0x4, offset = 0x4, fixed_abs, tag = 'smem constant byte address 0x4 - core index']
  #allocation1 [shape = 'u32[144,128]{1,0:T(1,128)}', space=vmem, size = 0x12000, scoped, tag = 'internal scratch']
  %s0 = inlined_call_operand.vmem [shape: f32[8,16], index: 0, kind: input, shape index: {}]
  %s1 = inlined_call_operand.hbm [shape: bf16[16,47], index: 1, kind: input, shape index: {}]
  %s2 = inlined_call_operand.vmem [shape: bf16[32,128], index: 2, kind: input, shape index: {}]
  %s3 = inlined_call_operand.hbm [shape: bf16[1,64,224], index: 3, kind: input, shape index: {}]
  %s4 = inlined_call_operand.vmem [shape: bf16[32,8], index: 4, kind: input, shape index: {}]
  %s5 = inlined_call_operand.hbm [shape: f32[14,128], index: 5, kind: input, shape index: {}]
  %s6 = inlined_call_operand.hbm [shape: f32[8,8], index: 6, kind: output, shape index: {}]
  %s7 = sld [smem:[#allocation0]]
  $region46: #{_lambda_.1} parent=0
    _
  %s9 = ssub.s32 1, %s7
  %s10 = scalar_select 0, %s9, %s7
  $region1: #{_lambda_.1} parent=0
    #allocation2 [shape = 'u8[4096]{0}', space=vmem, size = 0x1000, scoped, tag = 'input window, operand 1, single buffered']
    #allocation3 [shape = 's32[1]{0}', space=sflag, size = 0x4, scoped, tag = 'scoped memory for _lambda_.1']
    #allocation4 [shape = 's32[1]{0}', space=sflag, size = 0x4, scoped, tag = 'scoped memory for _lambda_.1']
    #allocation5 [shape = 'u8[32768]{0}', space=vmem, size = 0x8000, scoped, tag = 'input window, operand 3, single buffered']
    #allocation6 [shape = 's32[1]{0}', space=sflag, size = 0x4, scoped, tag = 'scoped memory for _lambda_.1']
    #allocation7 [shape = 'u8[8192]{0}', space=vmem, size = 0x2000, scoped, tag = 'input window, operand 5, single buffered']
    #allocation8 [shape = 'u8[4096]{0}', space=vmem, size = 0x1000, scoped, tag = 'output window, operand 0, single buffered']
    %11 = vsyncpa [#allocation3], 0
    %12 = vsyncpa [#allocation6], 0
    %13 = vsyncpa [#allocation4], 0
    // Predicated region
    $region2: #{_lambda_.1} parent=1 // pred_check
      _
    $region3: #{_lambda_.1} parent=1 // pred_check_branch
      %15 = sbr.rel (0) target = $region5
    $region4: #{_lambda_.1} parent=1 // pred_region
      _
    $region5: #{_lambda_.1} parent=1 // pred_fallthru
      _
    // Predicated region
    $region6: #{_lambda_.1} parent=1 // pred_check
      _
    $region7: #{_lambda_.1} parent=1 // pred_check_branch
      %17 = sbr.rel (0) target = $region9
    $region8: #{_lambda_.1} parent=1 // pred_region
      %s19 = ssub.s32 128, 128
      %20 = vsyncadd [#allocation3], %s19
      %s21 = sshll.u32 [#allocation2], 4
      %s22 = int_to_ptr.vmem [resolvable:$true] %s21
      %27 = dma.hbm_to_vmem [thread:$0]  %s1, 128, %s22, [#allocation3], 64, 64, 4
    $region9: #{_lambda_.1} parent=1 // pred_fallthru
      _
    // Predicated region
    $region10: #{_lambda_.1} parent=1 // pred_check
      _
    $region11: #{_lambda_.1} parent=1 // pred_check_branch
      %29 = sbr.rel (0) target = $region13
    $region12: #{_lambda_.1} parent=1 // pred_region
      _
    $region13: #{_lambda_.1} parent=1 // pred_fallthru
      _
    // Predicated region
    $region14: #{_lambda_.1} parent=1 // pred_check
      _
    $region15: #{_lambda_.1} parent=1 // pred_check_branch
      %31 = sbr.rel (0) target = $region17
    $region16: #{_lambda_.1} parent=1 // pred_region
      %s33 = ssub.s32 1024, 1024
      %34 = vsyncadd [#allocation6], %s33
      %s35 = sshll.u32 [#allocation5], 4
      %s36 = int_to_ptr.vmem [resolvable:$true] %s35
      %41 = dma.hbm_to_vmem [thread:$0]  %s3, 1024, %s36, [#allocation6], 128, 128, 8
    $region17: #{_lambda_.1} parent=1 // pred_fallthru
      _
    // Predicated region
    $region18: #{_lambda_.1} parent=1 // pred_check
      _
    $region19: #{_lambda_.1} parent=1 // pred_check_branch
      %43 = sbr.rel (0) target = $region21
    $region20: #{_lambda_.1} parent=1 // pred_region
      _
    $region21: #{_lambda_.1} parent=1 // pred_fallthru
      _
    // Predicated region
    $region22: #{_lambda_.1} parent=1 // pred_check
      _
    $region23: #{_lambda_.1} parent=1 // pred_check_branch
      %45 = sbr.rel (0) target = $region25
    $region24: #{_lambda_.1} parent=1 // pred_region
      %s47 = ssub.s32 256, 256
      %48 = vsyncadd [#allocation6], %s47
      %s49 = sshll.u32 [#allocation7], 4
      %s50 = int_to_ptr.vmem [resolvable:$true] %s49
      %55 = dma.hbm_to_vmem [thread:$0]  %s5, 256, %s50, [#allocation6], 128, 128, 8
    $region25: #{_lambda_.1} parent=1 // pred_fallthru
      _
    // Predicated region
    $region26: #{_lambda_.1} parent=1 // pred_check
      _
    $region27: #{_lambda_.1} parent=1 // pred_check_branch
      %57 = sbr.rel (0) target = $region29
    $region28: #{_lambda_.1} parent=1 // pred_region
      %58 = dma.done [#allocation3], 128
    $region29: #{_lambda_.1} parent=1 // pred_fallthru
      _
    // Predicated region
    $region30: #{_lambda_.1} parent=1 // pred_check
      _
    $region31: #{_lambda_.1} parent=1 // pred_check_branch
      %60 = sbr.rel (0) target = $region33
    $region32: #{_lambda_.1} parent=1 // pred_region
      %61 = dma.done [#allocation6], 1024
    $region33: #{_lambda_.1} parent=1 // pred_fallthru
      _
    // Predicated region
    $region34: #{_lambda_.1} parent=1 // pred_check
      _
    $region35: #{_lambda_.1} parent=1 // pred_check_branch
      %63 = sbr.rel (0) target = $region37
    $region36: #{_lambda_.1} parent=1 // pred_region
      %64 = dma.done [#allocation6], 256
    $region37: #{_lambda_.1} parent=1 // pred_fallthru
      _
    %v66 = vld [vmem:[%s0] sm:$0xff]
    %vm67 = vcmask 130048
    %v68 = vsel %vm67, %v66, 0.0
    %69 = vadd.xlane.f32.xlu0 %v68
    %v70 = vpop.xlane.xlu0 %69
    %v71 = vrcp.pop 16.0
    %v72 = vmul.f32 %v70, %v71
    %v73 = vsub.f32 %v66, %v72
    %v74 = vmul.f32 %v73, %v73
    %v75 = vsel %vm67, %v74, 0.0
    %76 = vadd.xlane.f32.xlu0 %v75
    %v77 = vpop.xlane.xlu0 %76
    %v78 = vmul.f32 %v77, %v71
    %v79 = vadd.f32 %v78, 1e-05
    %v80 = vrsqrt.pop %v79
    %v81 = vmul.f32 %v79, %v80
    %vm82 = vcmp.eq.f32.partialorder %v79, inf
    %v83 = vsel %vm82, %v79, %v81
    %vm84 = vcmp.eq.f32.partialorder %v79, 0.0
    %v85 = vand.u32 %v79, 2147483648
    %v86 = vsel %vm84, %v85, %v83
    %v87 = vrcp.pop %v86
    %v88 = vmul.f32 %v73, %v87
    %v89 = vld [vmem:[#allocation7 + $0x2] sm:$0x1]
    %s91 = vtos %v89
    %v92 = vstv %s91
    %v94 = vmul.f32 %v88, %v92
    %95 = vrot.lane.b32.xlu0 %v89, 127
    %v96 = vpop.permute.xlu0 %95
    %s97 = vtos %v96
    %v98 = vstv %s97
    %v100 = vadd.f32 %v94, %v98
    %v101 = vpack.c.bf16 %v100, %v100
    %v102 = vld [vmem:[#allocation2] sm:$0xf]
    %v103 = vld [vmem:[#allocation2 + $0x4] sm:$0xf]
    %v106 = vunpack.c.l.b16 %v102
    %v107 = vunpack.c.l.b16 %v103
    %v108 = vpack.c.b16 %v107, %v106
    %v111 = vsel %vm67, %v101, 0
    %113 = vmatprep.subr.bf16.mxu0 0
    %114 = vmatpush1.bf16.msra.mxu0 0
    %115 = vmatprep.subr.bf16.mxu0 0
    %116 = vmatpush1.bf16.msra.mxu0 0
    %117 = vmatprep.subr.bf16.mxu0 0
    %118 = vmatpush1.bf16.msra.mxu0 0
    %119 = vmatprep.subr.bf16.mxu0 0
    %120 = vmatpush1.bf16.msra.mxu0 0
    %121 = vmatprep.subr.bf16.mxu0 0
    %122 = vmatpush1.bf16.msra.mxu0 0
    %123 = vmatprep.subr.bf16.mxu0 0
    %124 = vmatpush1.bf16.msra.mxu0 0
    %125 = vmatprep.subr.bf16.mxu0 0
    %126 = vmatpush1.bf16.msra.mxu0 0
    %127 = vmatprep.subr.bf16.mxu0 0
    %128 = vmatpush1.bf16.msra.mxu0 %v108
    %129 = vmatprep.subr.bf16.mxu0 0
    %130 = vmatpush2.bf16.msra.mxu0 0
    %131 = vmatprep.subr.bf16.mxu0 0
    %132 = vmatpush2.bf16.msra.mxu0 0
    %133 = vmatprep.subr.bf16.mxu0 0
    %134 = vmatpush2.bf16.msra.mxu0 0
    %135 = vmatprep.subr.bf16.mxu0 0
    %136 = vmatpush2.bf16.msra.mxu0 0
    %137 = vmatprep.subr.bf16.mxu0 0
    %138 = vmatpush2.bf16.msra.mxu0 0
    %139 = vmatprep.subr.bf16.mxu0 0
    %140 = vmatpush2.bf16.msra.mxu0 0
    %141 = vmatprep.subr.bf16.mxu0 0
    %142 = vmatpush2.bf16.msra.mxu0 0
    %143 = vmatprep.subr.bf16.mxu0 0
    %144 = vmatpush2.bf16.msra.mxu0 0
    %145 = vmatprep.mubr.bf16.mxu0 0
    %146 = vmatmul.mubr.bf16.gmra.mxu0 %v111
    %v147 = vpop.f32.mrf.mxu0
    %v148 = vadd.f32 0.0, %v147
    %v149 = vpop.f32.mrf.mxu0
    %v150 = vpop.f32.mrf.mxu0
    %v151 = vpop.f32.mrf.mxu0
    %152 = vdwg.mxu0
    %v153 = vld [vmem:[#allocation7] sm:$0x1]
    %v154 = vlaneseq
    %v155 = vshrl.u32 %v154, 7
    %v156 = vsub.s32 0, %v155
    %v157 = vrot.slane %v153, %v156
    %v158 = vadd.f32 %v148, %v157
    %160 = vrot.lane.b32.xlu0 %v148, 124
    %v161 = vpop.permute.xlu0 %160
    %v163 = vsub.f32 %v100, %v161
    %vm164 = vcmask 31744
    %v165 = vsel %vm164, %v158, -inf
    %166 = vmax.xlane.f32.xlu0 %v165
    %v167 = vpop.xlane.xlu0 %166
    %v168 = vsub.f32 %v158, %v167
    %v169 = vmul.f32 %v168, 1.442695
    %v170 = vpow.pop %v169
    %v171 = vsel %vm164, %v170, 0.0
    %172 = vadd.xlane.f32.xlu0 %v171
    %v173 = vpop.xlane.xlu0 %172
    %v174 = vrcp.pop %v173
    %v175 = vmul.f32 %v170, %v174
    %v176 = vlaneseq
    %v177 = vand.u32 %v176, 127
    %v178 = vsel %vm164, %v175, -inf
    %179 = vmax.xlane.f32.xlu0 %v178
    %v180 = vpop.xlane.xlu0 %179
    %vm181 = vcmp.ge.f32.partialorder %v175, %v180
    %v182 = vsel %vm181, %v177, 4
    %v183 = vsel %vm164, %v182, 2147483647
    %v184 = vand.u32 %v183, 65535
    %v185 = vshra.s32 %v183, 16
    %v186 = vcvt.s32.f32 %v184
    %v187 = vcvt.s32.f32 %v185
    %188 = vmin.xlane.f32.xlu0 %v187
    %v189 = vpop.xlane.xlu0 %188
    %vm190 = vcmp.eq.f32.partialorder %v187, %v189
    %v191 = vsel %vm190, %v186, inf
    %192 = vmin.xlane.f32.xlu0 %v191
    %v193 = vpop.xlane.xlu0 %192
    %v194 = vcvt.f32.s32 %v193
    %v195 = vcvt.f32.s32 %v189
    %v196 = vshll.u32 %v195, 16
    %v197 = vadd.s32 %v196, %v194
    %vm198 = vcmp.eq.s32.totalorder %v177, %v197
    %v199 = vsel %vm198, 1, 0
    %v200 = vcvt.s32.f32 %v199
    %v201 = vmul.f32 %v200, %v175
    %v202 = vadd.f32 %v201, 0.0
    %vm203 = vcmp.gt.f32.partialorder %v200, 0.0
    %v204 = vsel %vm203, -1.0, %v175
    %v205 = vsel %vm164, %v204, -inf
    %206 = vmax.xlane.f32.xlu0 %v205
    %v207 = vpop.xlane.xlu0 %206
    %vm208 = vcmp.ge.f32.partialorder %v204, %v207
    %v209 = vsel %vm208, %v177, 4
    %v210 = vsel %vm164, %v209, 2147483647
    %v211 = vand.u32 %v210, 65535
    %v212 = vshra.s32 %v210, 16
    %v213 = vcvt.s32.f32 %v211
    %v214 = vcvt.s32.f32 %v212
    %215 = vmin.xlane.f32.xlu0 %v214
    %v216 = vpop.xlane.xlu0 %215
    %vm217 = vcmp.eq.f32.partialorder %v214, %v216
    %v218 = vsel %vm217, %v213, inf
    %219 = vmin.xlane.f32.xlu0 %v218
    %v220 = vpop.xlane.xlu0 %219
    %v221 = vcvt.f32.s32 %v220
    %v222 = vcvt.f32.s32 %v216
    %v223 = vshll.u32 %v222, 16
    %v224 = vadd.s32 %v223, %v221
    %vm225 = vcmp.eq.s32.totalorder %v177, %v224
    %v226 = vsel %vm225, 1, 0
    %v227 = vcvt.s32.f32 %v226
    %v228 = vmul.f32 %v227, %v204
    %v229 = vadd.f32 %v202, %v228
    %v230 = vsel %vm164, %v229, 0.0
    %231 = vadd.xlane.f32.xlu0 %v230
    %v232 = vpop.xlane.xlu0 %231
    %v233 = vadd.f32 %v232, 1e-06
    %v234 = vrcp.pop %v233
    %v235 = vmul.f32 %v229, %v234
    %236 = vrot.lane.b32.xlu0 %v148, 12
    %v237 = vpop.permute.xlu0 %236
    %v239 = vsel %vm67, %v163, %v237
    %v240 = vpack.c.bf16 %v239, %v239
    %v241 = vld [vmem:[%s2] sm:$0xf]
    %v242 = vld [vmem:[%s2 + $0x4] sm:$0xf]
    %v243 = vld [vmem:[%s2 + $0x8] sm:$0xf]
    %v244 = vld [vmem:[%s2 + $0xc] sm:$0xf]
    %v245 = vld [vmem:[#allocation7 + $0x1] sm:$0x1]
    %v246 = vlaneseq
    %v247 = vshrl.u32 %v246, 7
    %v248 = vsub.s32 0, %v247
    %v249 = vrot.slane %v245, %v248
    %v254 = vunpack.c.l.b16 %v241
    %v255 = vunpack.c.l.b16 %v242
    %v256 = vunpack.c.l.b16 %v243
    %v257 = vunpack.c.l.b16 %v244
    %v258 = vpack.c.b16 %v255, %v254
    %v259 = vpack.c.b16 %v257, %v256
    %vm262 = vcmask 261120
    %v264 = vsel %vm262, %v240, 0
    %266 = vmatprep.subr.bf16.mxu0 0
    %267 = vmatpush1.bf16.msra.mxu0 0
    %268 = vmatprep.subr.bf16.mxu0 0
    %269 = vmatpush1.bf16.msra.mxu0 0
    %270 = vmatprep.subr.bf16.mxu0 0
    %271 = vmatpush1.bf16.msra.mxu0 0
    %272 = vmatprep.subr.bf16.mxu0 0
    %273 = vmatpush1.bf16.msra.mxu0 0
    %274 = vmatprep.subr.bf16.mxu0 0
    %275 = vmatpush1.bf16.msra.mxu0 0
    %276 = vmatprep.subr.bf16.mxu0 0
    %277 = vmatpush1.bf16.msra.mxu0 0
    %278 = vmatprep.subr.bf16.mxu0 0
    %279 = vmatpush1.bf16.msra.mxu0 %v259
    %280 = vmatprep.subr.bf16.mxu0 0
    %281 = vmatpush1.bf16.msra.mxu0 %v258
    %282 = vmatprep.subr.bf16.mxu0 0
    %283 = vmatpush2.bf16.msra.mxu0 0
    %284 = vmatprep.subr.bf16.mxu0 0
    %285 = vmatpush2.bf16.msra.mxu0 0
    %286 = vmatprep.subr.bf16.mxu0 0
    %287 = vmatpush2.bf16.msra.mxu0 0
    %288 = vmatprep.subr.bf16.mxu0 0
    %289 = vmatpush2.bf16.msra.mxu0 0
    %290 = vmatprep.subr.bf16.mxu0 0
    %291 = vmatpush2.bf16.msra.mxu0 0
    %292 = vmatprep.subr.bf16.mxu0 0
    %293 = vmatpush2.bf16.msra.mxu0 0
    %294 = vmatprep.subr.bf16.mxu0 0
    %295 = vmatpush2.bf16.msra.mxu0 0
    %296 = vmatprep.subr.bf16.mxu0 0
    %297 = vmatpush2.bf16.msra.mxu0 0
    %298 = vmatprep.mubr.bf16.mxu0 0
    %299 = vmatmul.mubr.bf16.gmra.mxu0 %v264
    %v300 = vpop.f32.mrf.mxu0
    %v301 = vadd.f32 %v249, %v300
    %v302 = vpop.f32.mrf.mxu0
    %v303 = vpop.f32.mrf.mxu0
    %v304 = vpop.f32.mrf.mxu0
    %305 = vdwg.mxu0
    %307 = vset.pattern.permute.xlu0 0
    %308 = vperm.xlu0 %307, %v235
    %v309 = vpop.permute.xlu0 %308
    %v311 = vmul.f32 %v309, %v301
    %v312 = vadd.f32 %v311, 0.0
    %313 = vset.pattern.permute.xlu0 1
    %314 = vperm.xlu0 %313, %v235
    %v315 = vpop.permute.xlu0 %314
    %v317 = vmul.f32 %v315, %v301
    %319 = vrot.lane.b32.xlu0 %v317, 96
    %v320 = vpop.permute.xlu0 %319
    %v322 = vadd.f32 %v312, %v320
    %323 = vset.pattern.permute.xlu0 2
    %324 = vperm.xlu0 %323, %v235
    %v325 = vpop.permute.xlu0 %324
    %v327 = vmul.f32 %v325, %v301
    %329 = vrot.lane.b32.xlu0 %v327, 64
    %v330 = vpop.permute.xlu0 %329
    %v332 = vadd.f32 %v322, %v330
    %333 = vset.pattern.permute.xlu0 3
    %334 = vperm.xlu0 %333, %v235
    %v335 = vpop.permute.xlu0 %334
    %v337 = vmul.f32 %v335, %v301
    %339 = vrot.lane.b32.xlu0 %v337, 32
    %v340 = vpop.permute.xlu0 %339
    %v342 = vadd.f32 %v332, %v340
    %v343 = vpack.c.bf16 %v66, %v66
    %344 = vrot.lane.b32.xlu0 %v108, 108
    %v345 = vpop.permute.xlu0 %344
    %v348 = vsel %vm67, %v343, 0
    %350 = vmatprep.subr.bf16.mxu0 0
    %351 = vmatpush1.bf16.msra.mxu0 0
    %352 = vmatprep.subr.bf16.mxu0 0
    %353 = vmatpush1.bf16.msra.mxu0 0
    %354 = vmatprep.subr.bf16.mxu0 0
    %355 = vmatpush1.bf16.msra.mxu0 0
    %356 = vmatprep.subr.bf16.mxu0 0
    %357 = vmatpush1.bf16.msra.mxu0 0
    %358 = vmatprep.subr.bf16.mxu0 0
    %359 = vmatpush1.bf16.msra.mxu0 0
    %360 = vmatprep.subr.bf16.mxu0 0
    %361 = vmatpush1.bf16.msra.mxu0 0
    %362 = vmatprep.subr.bf16.mxu0 0
    %363 = vmatpush1.bf16.msra.mxu0 0
    %364 = vmatprep.subr.bf16.mxu0 0
    %365 = vmatpush1.bf16.msra.mxu0 %v345
    %366 = vmatprep.subr.bf16.mxu0 0
    %367 = vmatpush2.bf16.msra.mxu0 0
    %368 = vmatprep.subr.bf16.mxu0 0
    %369 = vmatpush2.bf16.msra.mxu0 0
    %370 = vmatprep.subr.bf16.mxu0 0
    %371 = vmatpush2.bf16.msra.mxu0 0
    %372 = vmatprep.subr.bf16.mxu0 0
    %373 = vmatpush2.bf16.msra.mxu0 0
    %374 = vmatprep.subr.bf16.mxu0 0
    %375 = vmatpush2.bf16.msra.mxu0 0
    %376 = vmatprep.subr.bf16.mxu0 0
    %377 = vmatpush2.bf16.msra.mxu0 0
    %378 = vmatprep.subr.bf16.mxu0 0
    %379 = vmatpush2.bf16.msra.mxu0 0
    %380 = vmatprep.subr.bf16.mxu0 0
    %381 = vmatpush2.bf16.msra.mxu0 0
    %382 = vmatprep.mubr.bf16.mxu0 0
    %383 = vmatmul.mubr.bf16.gmra.mxu0 %v348
    %v384 = vpop.f32.mrf.mxu0
    %v385 = vadd.f32 0.0, %v384
    %v386 = vpop.f32.mrf.mxu0
    %v387 = vpop.f32.mrf.mxu0
    %v388 = vpop.f32.mrf.mxu0
    %389 = vdwg.mxu0
    %v390 = vmul.f32 %v385, %v385
    %392 = vrot.lane.b32.xlu0 %v390, 119
    %v393 = vpop.permute.xlu0 %392
    %v395 = vadd.f32 %v390, %v393
    %v396 = vrsqrt.pop %v395
    %v397 = vmul.f32 %v395, %v396
    %vm398 = vcmp.eq.f32.partialorder %v395, inf
    %v399 = vsel %vm398, %v395, %v397
    %vm400 = vcmp.eq.f32.partialorder %v395, 0.0
    %v401 = vand.u32 %v395, 2147483648
    %v402 = vsel %vm400, %v401, %v399
    %vm403 = vcmask 72704
    %v404 = vsel %vm403, %v402, 0.0
    %v405 = vpack.c.bf16 %v404, %v404
    %406 = vrot.lane.b32.xlu0 %v108, 90
    %v407 = vpop.permute.xlu0 %406
    %v410 = vsel %vm67, %v405, 0
    %412 = vmatprep.subr.bf16.mxu0 0
    %413 = vmatpush1.bf16.msra.mxu0 0
    %414 = vmatprep.subr.bf16.mxu0 0
    %415 = vmatpush1.bf16.msra.mxu0 0
    %416 = vmatprep.subr.bf16.mxu0 0
    %417 = vmatpush1.bf16.msra.mxu0 0
    %418 = vmatprep.subr.bf16.mxu0 0
    %419 = vmatpush1.bf16.msra.mxu0 0
    %420 = vmatprep.subr.bf16.mxu0 0
    %421 = vmatpush1.bf16.msra.mxu0 0
    %422 = vmatprep.subr.bf16.mxu0 0
    %423 = vmatpush1.bf16.msra.mxu0 0
    %424 = vmatprep.subr.bf16.mxu0 0
    %425 = vmatpush1.bf16.msra.mxu0 0
    %426 = vmatprep.subr.bf16.mxu0 0
    %427 = vmatpush1.bf16.msra.mxu0 %v407
    %428 = vmatprep.subr.bf16.mxu0 0
    %429 = vmatpush2.bf16.msra.mxu0 0
    %430 = vmatprep.subr.bf16.mxu0 0
    %431 = vmatpush2.bf16.msra.mxu0 0
    %432 = vmatprep.subr.bf16.mxu0 0
    %433 = vmatpush2.bf16.msra.mxu0 0
    %434 = vmatprep.subr.bf16.mxu0 0
    %435 = vmatpush2.bf16.msra.mxu0 0
    %436 = vmatprep.subr.bf16.mxu0 0
    %437 = vmatpush2.bf16.msra.mxu0 0
    %438 = vmatprep.subr.bf16.mxu0 0
    %439 = vmatpush2.bf16.msra.mxu0 0
    %440 = vmatprep.subr.bf16.mxu0 0
    %441 = vmatpush2.bf16.msra.mxu0 0
    %442 = vmatprep.subr.bf16.mxu0 0
    %443 = vmatpush2.bf16.msra.mxu0 0
    %444 = vmatprep.mubr.bf16.mxu0 0
    %445 = vmatmul.mubr.bf16.gmra.mxu0 %v410
    %v446 = vpop.f32.mrf.mxu0
    %v447 = vadd.f32 0.0, %v446
    %v448 = vpop.f32.mrf.mxu0
    %v449 = vpop.f32.mrf.mxu0
    %v450 = vpop.f32.mrf.mxu0
    %451 = vdwg.mxu0
    %v452 = vlaneseq
    %v453 = vshrl.u32 %v452, 7
    %vm454 = vcmp.eq.s32.totalorder %v453, %v177
    %v455 = vsel %vm454, 1, 0
    %v456 = vcvt.s32.f32 %v455
    %v457 = vsub.f32 1.0, %v456
    %v459 = vsel %vm403, %v447, 0
    %461 = vmatprep.subr.mxu0 0.0
    %462 = vmatpush1.xpose.msra.mxu0 0.0
    %463 = vmatprep.subr.mxu0 0.0
    %464 = vmatpush1.xpose.msra.mxu0 0.0
    %465 = vmatprep.subr.mxu0 0.0
    %466 = vmatpush1.xpose.msra.mxu0 0.0
    %467 = vmatprep.subr.mxu0 0.0
    %468 = vmatpush1.xpose.msra.mxu0 0.0
    %469 = vmatprep.subr.mxu0 0.0
    %470 = vmatpush1.xpose.msra.mxu0 0.0
    %471 = vmatprep.subr.mxu0 0.0
    %472 = vmatpush1.xpose.msra.mxu0 0.0
    %473 = vmatprep.subr.mxu0 0.0
    %474 = vmatpush1.xpose.msra.mxu0 0.0
    %475 = vmatprep.subr.mxu0 0.0
    %476 = vmatpush1.xpose.msra.mxu0 0.0
    %477 = vmatprep.subr.mxu0 0.0
    %478 = vmatpush1.xpose.msra.mxu0 0.0
    %479 = vmatprep.subr.mxu0 0.0
    %480 = vmatpush1.xpose.msra.mxu0 0.0
    %481 = vmatprep.subr.mxu0 0.0
    %482 = vmatpush1.xpose.msra.mxu0 0.0
    %483 = vmatprep.subr.mxu0 0.0
    %484 = vmatpush1.xpose.msra.mxu0 0.0
    %485 = vmatprep.subr.mxu0 0.0
    %486 = vmatpush1.xpose.msra.mxu0 0.0
    %487 = vmatprep.subr.mxu0 0.0
    %488 = vmatpush1.xpose.msra.mxu0 0.0
    %489 = vmatprep.subr.mxu0 0.0
    %490 = vmatpush1.xpose.msra.mxu0 0.0
    %491 = vmatprep.subr.mxu0 0.0
    %492 = vmatpush1.xpose.msra.mxu0 %v459
    %493 = vmatprep.subr.mxu0 0.0
    %494 = vmatpush2.xpose.msra.mxu0 0.0
    %495 = vmatprep.subr.mxu0 0.0
    %496 = vmatpush2.xpose.msra.mxu0 0.0
    %497 = vmatprep.subr.mxu0 0.0
    %498 = vmatpush2.xpose.msra.mxu0 0.0
    %499 = vmatprep.subr.mxu0 0.0
    %500 = vmatpush2.xpose.msra.mxu0 0.0
    %501 = vmatprep.subr.mxu0 0.0
    %502 = vmatpush2.xpose.msra.mxu0 0.0
    %503 = vmatprep.subr.mxu0 0.0
    %504 = vmatpush2.xpose.msra.mxu0 0.0
    %505 = vmatprep.subr.mxu0 0.0
    %506 = vmatpush2.xpose.msra.mxu0 0.0
    %507 = vmatprep.subr.mxu0 0.0
    %508 = vmatpush2.xpose.msra.mxu0 0.0
    %509 = vmatprep.subr.mxu0 0.0
    %510 = vmatpush2.xpose.msra.mxu0 0.0
    %511 = vmatprep.subr.mxu0 0.0
    %512 = vmatpush2.xpose.msra.mxu0 0.0
    %513 = vmatprep.subr.mxu0 0.0
    %514 = vmatpush2.xpose.msra.mxu0 0.0
    %515 = vmatprep.subr.mxu0 0.0
    %516 = vmatpush2.xpose.msra.mxu0 0.0
    %517 = vmatprep.subr.mxu0 0.0
    %518 = vmatpush2.xpose.msra.mxu0 0.0
    %519 = vmatprep.subr.mxu0 0.0
    %520 = vmatpush2.xpose.msra.mxu0 0.0
    %521 = vmatprep.subr.mxu0 0.0
    %522 = vmatpush2.xpose.msra.mxu0 0.0
    %523 = vmatprep.subr.mxu0 0.0
    %524 = vmatpush2.xpose.msra.mxu0 0.0
    %525 = vmatprep.mubr.f32.mxu0 0.0
    %526 = vmatmul.mubr.f32.gmra.mxu0 %v459
    %v527 = vpop.f32.mrf.mxu0
    %v528 = vadd.f32 0.0, %v527
    %v529 = vpop.f32.mrf.mxu0
    %530 = vdwg.mxu0
    %v531 = vmul.f32 %v447, %v447
    %vm532 = vcmask 68608
    %v533 = vsel %vm532, %v531, 0.0
    %534 = vadd.xlane.f32.xlu0 %v533
    %v535 = vpop.xlane.xlu0 %534
    %v537 = vlaneseq
    %v538 = vshrl.u32 %v537, 7
    %v539 = vsub.s32 %v177, %v538
    %v540 = vrot.slane %v535, %v539
    %vm541 = vcmask 1042434
    %v542 = vsel %vm541, %v540, %v540
    %vm543 = vcmask 1043459
    %v544 = vsel %vm543, %v540, %v542
    %v546 = vadd.f32 %v535, %v544
    %v547 = vmul.f32 %v528, 2.0
    %v548 = vsub.f32 %v546, %v547
    %v549 = vmax.f32 %v548, 0.0
    %v550 = vadd.f32 %v549, 1e-10
    %v551 = vrcp.pop %v550
    %v552 = vmul.f32 1.0, %v551
    %v553 = vmul.f32 %v552, %v457
    %vm554 = vcmask 27648
    %v555 = vsel %vm554, %v553, -inf
    %556 = vmax.xlane.f32.xlu0 %v555
    %v557 = vpop.xlane.xlu0 %556
    %v558 = vrcp.pop %v557
    %v559 = vmul.f32 %v553, %v558
    %v560 = vmul.f32 %v559, %v457
    %v561 = vadd.f32 %v560, %v456
    %vm562 = vcmp.ge.f32.partialorder %v561, 0.5
    %v563 = vsel %vm562, 0.0, -1e+30
    %v564 = vrot.slane %v447, 4
    %v565 = vsel %vm403, %v564, 0
    %567 = vmatprep.subr.mxu0 0.0
    %568 = vmatpush1.xpose.msra.mxu0 0.0
    %569 = vmatprep.subr.mxu0 0.0
    %570 = vmatpush1.xpose.msra.mxu0 0.0
    %571 = vmatprep.subr.mxu0 0.0
    %572 = vmatpush1.xpose.msra.mxu0 0.0
    %573 = vmatprep.subr.mxu0 0.0
    %574 = vmatpush1.xpose.msra.mxu0 0.0
    %575 = vmatprep.subr.mxu0 0.0
    %576 = vmatpush1.xpose.msra.mxu0 0.0
    %577 = vmatprep.subr.mxu0 0.0
    %578 = vmatpush1.xpose.msra.mxu0 0.0
    %579 = vmatprep.subr.mxu0 0.0
    %580 = vmatpush1.xpose.msra.mxu0 0.0
    %581 = vmatprep.subr.mxu0 0.0
    %582 = vmatpush1.xpose.msra.mxu0 0.0
    %583 = vmatprep.subr.mxu0 0.0
    %584 = vmatpush1.xpose.msra.mxu0 0.0
    %585 = vmatprep.subr.mxu0 0.0
    %586 = vmatpush1.xpose.msra.mxu0 0.0
    %587 = vmatprep.subr.mxu0 0.0
    %588 = vmatpush1.xpose.msra.mxu0 0.0
    %589 = vmatprep.subr.mxu0 0.0
    %590 = vmatpush1.xpose.msra.mxu0 0.0
    %591 = vmatprep.subr.mxu0 0.0
    %592 = vmatpush1.xpose.msra.mxu0 0.0
    %593 = vmatprep.subr.mxu0 0.0
    %594 = vmatpush1.xpose.msra.mxu0 0.0
    %595 = vmatprep.subr.mxu0 0.0
    %596 = vmatpush1.xpose.msra.mxu0 0.0
    %597 = vmatprep.subr.mxu0 0.0
    %598 = vmatpush1.xpose.msra.mxu0 %v565
    %599 = vmatprep.subr.mxu0 0.0
    %600 = vmatpush2.xpose.msra.mxu0 0.0
    %601 = vmatprep.subr.mxu0 0.0
    %602 = vmatpush2.xpose.msra.mxu0 0.0
    %603 = vmatprep.subr.mxu0 0.0
    %604 = vmatpush2.xpose.msra.mxu0 0.0
    %605 = vmatprep.subr.mxu0 0.0
    %606 = vmatpush2.xpose.msra.mxu0 0.0
    %607 = vmatprep.subr.mxu0 0.0
    %608 = vmatpush2.xpose.msra.mxu0 0.0
    %609 = vmatprep.subr.mxu0 0.0
    %610 = vmatpush2.xpose.msra.mxu0 0.0
    %611 = vmatprep.subr.mxu0 0.0
    %612 = vmatpush2.xpose.msra.mxu0 0.0
    %613 = vmatprep.subr.mxu0 0.0
    %614 = vmatpush2.xpose.msra.mxu0 0.0
    %615 = vmatprep.subr.mxu0 0.0
    %616 = vmatpush2.xpose.msra.mxu0 0.0
    %617 = vmatprep.subr.mxu0 0.0
    %618 = vmatpush2.xpose.msra.mxu0 0.0
    %619 = vmatprep.subr.mxu0 0.0
    %620 = vmatpush2.xpose.msra.mxu0 0.0
    %621 = vmatprep.subr.mxu0 0.0
    %622 = vmatpush2.xpose.msra.mxu0 0.0
    %623 = vmatprep.subr.mxu0 0.0
    %624 = vmatpush2.xpose.msra.mxu0 0.0
    %625 = vmatprep.subr.mxu0 0.0
    %626 = vmatpush2.xpose.msra.mxu0 0.0
    %627 = vmatprep.subr.mxu0 0.0
    %628 = vmatpush2.xpose.msra.mxu0 0.0
    %629 = vmatprep.subr.mxu0 0.0
    %630 = vmatpush2.xpose.msra.mxu0 0.0
    %631 = vmatprep.mubr.f32.mxu0 0.0
    %632 = vmatmul.mubr.f32.gmra.mxu0 %v565
    %v633 = vpop.f32.mrf.mxu0
    %v634 = vadd.f32 0.0, %v633
    %v635 = vpop.f32.mrf.mxu0
    %636 = vdwg.mxu0
    %vm637 = vcmask 72708
    %v638 = vsel %vm637, %v531, 0.0
    %639 = vadd.xlane.f32.xlu0 %v638
    %v640 = vpop.xlane.xlu0 %639
    %v642 = vadd.s32 %v177, 4
    %v643 = vlaneseq
    %v644 = vshrl.u32 %v643, 7
    %v645 = vsub.s32 %v642, %v644
    %v646 = vrot.slane %v640, %v645
    %vm647 = vcmask 1046534
    %v648 = vsel %vm647, %v646, %v646
    %vm649 = vcmask 1047559
    %v650 = vsel %vm649, %v646, %v648
    %v652 = vadd.f32 %v640, %v650
    %v653 = vmul.f32 %v634, 2.0
    %v655 = vrot.slane %v653, 4
    %v657 = vsub.f32 %v652, %v655
    %v658 = vmax.f32 %v657, 0.0
    %v659 = vadd.f32 %v658, 1e-10
    %v660 = vrcp.pop %v659
    %v661 = vmul.f32 1.0, %v660
    %v663 = vrot.slane %v457, 4
    %v665 = vmul.f32 %v661, %v663
    %vm666 = vcmask 31748
    %v667 = vsel %vm666, %v665, -inf
    %668 = vmax.xlane.f32.xlu0 %v667
    %v669 = vpop.xlane.xlu0 %668
    %v670 = vrcp.pop %v669
    %v671 = vmul.f32 %v665, %v670
    %v672 = vmul.f32 %v671, %v663
    %v674 = vrot.slane %v456, 4
    %v676 = vadd.f32 %v672, %v674
    %vm677 = vcmp.ge.f32.partialorder %v676, 0.5
    %v678 = vsel %vm677, 0.0, -1e+30
    %v679 = vpack.c.bf16 %v342, %v342
    %v680 = vld [vmem:[#allocation5] sm:$0xf]
    %v681 = vld [vmem:[#allocation5 + $0x8] sm:$0xf]
    %v682 = vld [vmem:[#allocation5 + $0x10] sm:$0xf]
    %v683 = vld [vmem:[#allocation5 + $0x18] sm:$0xf]
    %v684 = vld [vmem:[#allocation7 + $0x6] sm:$0x1]
    %v685 = vlaneseq
    %v686 = vshrl.u32 %v685, 7
    %v687 = vsub.s32 0, %v686
    %v688 = vrot.slane %v684, %v687
    %v693 = vunpack.c.l.b16 %v680
    %v694 = vunpack.c.l.b16 %v681
    %v695 = vunpack.c.l.b16 %v682
    %v696 = vunpack.c.l.b16 %v683
    %v697 = vpack.c.b16 %v694, %v693
    %v698 = vpack.c.b16 %v696, %v695
    %v702 = vsel %vm262, %v679, 0
    %704 = vmatprep.subr.bf16.mxu0 0
    %705 = vmatpush1.bf16.msra.mxu0 0
    %706 = vmatprep.subr.bf16.mxu0 0
    %707 = vmatpush1.bf16.msra.mxu0 0
    %708 = vmatprep.subr.bf16.mxu0 0
    %709 = vmatpush1.bf16.msra.mxu0 0
    %710 = vmatprep.subr.bf16.mxu0 0
    %711 = vmatpush1.bf16.msra.mxu0 0
    %712 = vmatprep.subr.bf16.mxu0 0
    %713 = vmatpush1.bf16.msra.mxu0 0
    %714 = vmatprep.subr.bf16.mxu0 0
    %715 = vmatpush1.bf16.msra.mxu0 0
    %716 = vmatprep.subr.bf16.mxu0 0
    %717 = vmatpush1.bf16.msra.mxu0 %v698
    %718 = vmatprep.subr.bf16.mxu0 0
    %719 = vmatpush1.bf16.msra.mxu0 %v697
    %720 = vmatprep.subr.bf16.mxu0 0
    %721 = vmatpush2.bf16.msra.mxu0 0
    %722 = vmatprep.subr.bf16.mxu0 0
    %723 = vmatpush2.bf16.msra.mxu0 0
    %724 = vmatprep.subr.bf16.mxu0 0
    %725 = vmatpush2.bf16.msra.mxu0 0
    %726 = vmatprep.subr.bf16.mxu0 0
    %727 = vmatpush2.bf16.msra.mxu0 0
    %728 = vmatprep.subr.bf16.mxu0 0
    %729 = vmatpush2.bf16.msra.mxu0 0
    %730 = vmatprep.subr.bf16.mxu0 0
    %731 = vmatpush2.bf16.msra.mxu0 0
    %732 = vmatprep.subr.bf16.mxu0 0
    %733 = vmatpush2.bf16.msra.mxu0 0
    %734 = vmatprep.subr.bf16.mxu0 0
    %735 = vmatpush2.bf16.msra.mxu0 0
    %736 = vmatprep.mubr.bf16.mxu0 0
    %737 = vmatmul.mubr.bf16.gmra.mxu0 %v702
    %v738 = vpop.f32.mrf.mxu0
    %v739 = vadd.f32 %v688, %v738
    %v740 = vpop.f32.mrf.mxu0
    %v741 = vpop.f32.mrf.mxu0
    %v742 = vpop.f32.mrf.mxu0
    %743 = vdwg.mxu0
    %v744 = vpack.c.bf16 %v739, %v739
    %746 = vrot.lane.b32.xlu0 %v744, 96
    %v747 = vpop.permute.xlu0 %746
    %vm748 = vcmask 64512
    %v750 = vsel %vm748, %v744, 0
    %v753 = vsel %vm748, %v747, 0
    %755 = vmatprep.subr.bf16.mxu0 0
    %756 = vmatpush1.bf16.xpose.msra.mxu0 0
    %757 = vmatprep.subr.bf16.mxu0 0
    %758 = vmatpush1.bf16.xpose.msra.mxu0 0
    %759 = vmatprep.subr.bf16.mxu0 0
    %760 = vmatpush1.bf16.xpose.msra.mxu0 0
    %761 = vmatprep.subr.bf16.mxu0 0
    %762 = vmatpush1.bf16.xpose.msra.mxu0 0
    %763 = vmatprep.subr.bf16.mxu0 0
    %764 = vmatpush1.bf16.xpose.msra.mxu0 0
    %765 = vmatprep.subr.bf16.mxu0 0
    %766 = vmatpush1.bf16.xpose.msra.mxu0 0
    %767 = vmatprep.subr.bf16.mxu0 0
    %768 = vmatpush1.bf16.xpose.msra.mxu0 0
    %769 = vmatprep.subr.bf16.mxu0 0
    %770 = vmatpush1.bf16.xpose.msra.mxu0 %v753
    %771 = vmatprep.subr.bf16.mxu0 0
    %772 = vmatpush2.bf16.xpose.msra.mxu0 0
    %773 = vmatprep.subr.bf16.mxu0 0
    %774 = vmatpush2.bf16.xpose.msra.mxu0 0
    %775 = vmatprep.subr.bf16.mxu0 0
    %776 = vmatpush2.bf16.xpose.msra.mxu0 0
    %777 = vmatprep.subr.bf16.mxu0 0
    %778 = vmatpush2.bf16.xpose.msra.mxu0 0
    %779 = vmatprep.subr.bf16.mxu0 0
    %780 = vmatpush2.bf16.xpose.msra.mxu0 0
    %781 = vmatprep.subr.bf16.mxu0 0
    %782 = vmatpush2.bf16.xpose.msra.mxu0 0
    %783 = vmatprep.subr.bf16.mxu0 0
    %784 = vmatpush2.bf16.xpose.msra.mxu0 0
    %785 = vmatprep.subr.bf16.mxu0 0
    %786 = vmatpush2.bf16.xpose.msra.mxu0 0
    %787 = vmatprep.mubr.bf16.mxu0 0
    %788 = vmatmul.mubr.bf16.gmra.mxu0 %v750
    %v789 = vpop.f32.mrf.mxu0
    %v790 = vadd.f32 0.0, %v789
    %v791 = vpop.f32.mrf.mxu0
    %v792 = vpop.f32.mrf.mxu0
    %v793 = vpop.f32.mrf.mxu0
    %794 = vdwg.mxu0
    %v795 = vmul.f32 %v790, 0.35355338
    %v796 = vadd.f32 %v795, %v563
    %v797 = vsel %vm554, %v796, -inf
    %798 = vmax.xlane.f32.xlu0 %v797
    %v799 = vpop.xlane.xlu0 %798
    %v800 = vsub.f32 %v796, %v799
    %v801 = vmul.f32 %v800, 1.442695
    %v802 = vpow.pop %v801
    %v803 = vsel %vm554, %v802, 0.0
    %804 = vadd.xlane.f32.xlu0 %v803
    %v805 = vpop.xlane.xlu0 %804
    %v806 = vrcp.pop %v805
    %v807 = vmul.f32 %v802, %v806
    %v808 = vpack.c.bf16 %v807, %v807
    %809 = vrot.lane.b32.xlu0 %v744, 64
    %v810 = vpop.permute.xlu0 %809
    %v812 = vsel %vm164, %v808, 0
    %vm814 = vcmask 1041408
    %v816 = vsel %vm814, %v810, 0
    %818 = vmatprep.subr.bf16.mxu0 0
    %819 = vmatpush1.bf16.msra.mxu0 0
    %820 = vmatprep.subr.bf16.mxu0 0
    %821 = vmatpush1.bf16.msra.mxu0 0
    %822 = vmatprep.subr.bf16.mxu0 0
    %823 = vmatpush1.bf16.msra.mxu0 0
    %824 = vmatprep.subr.bf16.mxu0 0
    %825 = vmatpush1.bf16.msra.mxu0 0
    %826 = vmatprep.subr.bf16.mxu0 0
    %827 = vmatpush1.bf16.msra.mxu0 0
    %828 = vmatprep.subr.bf16.mxu0 0
    %829 = vmatpush1.bf16.msra.mxu0 0
    %830 = vmatprep.subr.bf16.mxu0 0
    %831 = vmatpush1.bf16.msra.mxu0 0
    %832 = vmatprep.subr.bf16.mxu0 0
    %833 = vmatpush1.bf16.msra.mxu0 %v816
    %834 = vmatprep.subr.bf16.mxu0 0
    %835 = vmatpush2.bf16.msra.mxu0 0
    %836 = vmatprep.subr.bf16.mxu0 0
    %837 = vmatpush2.bf16.msra.mxu0 0
    %838 = vmatprep.subr.bf16.mxu0 0
    %839 = vmatpush2.bf16.msra.mxu0 0
    %840 = vmatprep.subr.bf16.mxu0 0
    %841 = vmatpush2.bf16.msra.mxu0 0
    %842 = vmatprep.subr.bf16.mxu0 0
    %843 = vmatpush2.bf16.msra.mxu0 0
    %844 = vmatprep.subr.bf16.mxu0 0
    %845 = vmatpush2.bf16.msra.mxu0 0
    %846 = vmatprep.subr.bf16.mxu0 0
    %847 = vmatpush2.bf16.msra.mxu0 0
    %848 = vmatprep.subr.bf16.mxu0 0
    %849 = vmatpush2.bf16.msra.mxu0 0
    %850 = vmatprep.mubr.bf16.mxu0 0
    %851 = vmatmul.mubr.bf16.gmra.mxu0 %v812
    %v852 = vpop.f32.mrf.mxu0
    %v853 = vadd.f32 0.0, %v852
    %v854 = vpop.f32.mrf.mxu0
    %v855 = vpop.f32.mrf.mxu0
    %v856 = vpop.f32.mrf.mxu0
    %857 = vdwg.mxu0
    %858 = vrot.lane.b32.xlu0 %v744, 120
    %v859 = vpop.permute.xlu0 %858
    %860 = vrot.lane.b32.xlu0 %v744, 88
    %v861 = vpop.permute.xlu0 %860
    %v863 = vsel %vm748, %v859, 0
    %v866 = vsel %vm748, %v861, 0
    %868 = vmatprep.subr.bf16.mxu0 0
    %869 = vmatpush1.bf16.xpose.msra.mxu0 0
    %870 = vmatprep.subr.bf16.mxu0 0
    %871 = vmatpush1.bf16.xpose.msra.mxu0 0
    %872 = vmatprep.subr.bf16.mxu0 0
    %873 = vmatpush1.bf16.xpose.msra.mxu0 0
    %874 = vmatprep.subr.bf16.mxu0 0
    %875 = vmatpush1.bf16.xpose.msra.mxu0 0
    %876 = vmatprep.subr.bf16.mxu0 0
    %877 = vmatpush1.bf16.xpose.msra.mxu0 0
    %878 = vmatprep.subr.bf16.mxu0 0
    %879 = vmatpush1.bf16.xpose.msra.mxu0 0
    %880 = vmatprep.subr.bf16.mxu0 0
    %881 = vmatpush1.bf16.xpose.msra.mxu0 0
    %882 = vmatprep.subr.bf16.mxu0 0
    %883 = vmatpush1.bf16.xpose.msra.mxu0 %v866
    %884 = vmatprep.subr.bf16.mxu0 0
    %885 = vmatpush2.bf16.xpose.msra.mxu0 0
    %886 = vmatprep.subr.bf16.mxu0 0
    %887 = vmatpush2.bf16.xpose.msra.mxu0 0
    %888 = vmatprep.subr.bf16.mxu0 0
    %889 = vmatpush2.bf16.xpose.msra.mxu0 0
    %890 = vmatprep.subr.bf16.mxu0 0
    %891 = vmatpush2.bf16.xpose.msra.mxu0 0
    %892 = vmatprep.subr.bf16.mxu0 0
    %893 = vmatpush2.bf16.xpose.msra.mxu0 0
    %894 = vmatprep.subr.bf16.mxu0 0
    %895 = vmatpush2.bf16.xpose.msra.mxu0 0
    %896 = vmatprep.subr.bf16.mxu0 0
    %897 = vmatpush2.bf16.xpose.msra.mxu0 0
    %898 = vmatprep.subr.bf16.mxu0 0
    %899 = vmatpush2.bf16.xpose.msra.mxu0 0
    %900 = vmatprep.mubr.bf16.mxu0 0
    %901 = vmatmul.mubr.bf16.gmra.mxu0 %v863
    %v902 = vpop.f32.mrf.mxu0
    %v903 = vadd.f32 0.0, %v902
    %v904 = vpop.f32.mrf.mxu0
    %v905 = vpop.f32.mrf.mxu0
    %v906 = vpop.f32.mrf.mxu0
    %907 = vdwg.mxu0
    %v908 = vmul.f32 %v903, 0.35355338
    %v909 = vadd.f32 %v908, %v563
    %v910 = vsel %vm554, %v909, -inf
    %911 = vmax.xlane.f32.xlu0 %v910
    %v912 = vpop.xlane.xlu0 %911
    %v913 = vsub.f32 %v909, %v912
    %v914 = vmul.f32 %v913, 1.442695
    %v915 = vpow.pop %v914
    %v916 = vsel %vm554, %v915, 0.0
    %917 = vadd.xlane.f32.xlu0 %v916
    %v918 = vpop.xlane.xlu0 %917
    %v919 = vrcp.pop %v918
    %v920 = vmul.f32 %v915, %v919
    %v921 = vpack.c.bf16 %v920, %v920
    %922 = vrot.lane.b32.xlu0 %v744, 56
    %v923 = vpop.permute.xlu0 %922
    %v925 = vsel %vm164, %v921, 0
    %v928 = vsel %vm814, %v923, 0
    %930 = vmatprep.subr.bf16.mxu0 0
    %931 = vmatpush1.bf16.msra.mxu0 0
    %932 = vmatprep.subr.bf16.mxu0 0
    %933 = vmatpush1.bf16.msra.mxu0 0
    %934 = vmatprep.subr.bf16.mxu0 0
    %935 = vmatpush1.bf16.msra.mxu0 0
    %936 = vmatprep.subr.bf16.mxu0 0
    %937 = vmatpush1.bf16.msra.mxu0 0
    %938 = vmatprep.subr.bf16.mxu0 0
    %939 = vmatpush1.bf16.msra.mxu0 0
    %940 = vmatprep.subr.bf16.mxu0 0
    %941 = vmatpush1.bf16.msra.mxu0 0
    %942 = vmatprep.subr.bf16.mxu0 0
    %943 = vmatpush1.bf16.msra.mxu0 0
    %944 = vmatprep.subr.bf16.mxu0 0
    %945 = vmatpush1.bf16.msra.mxu0 %v928
    %946 = vmatprep.subr.bf16.mxu0 0
    %947 = vmatpush2.bf16.msra.mxu0 0
    %948 = vmatprep.subr.bf16.mxu0 0
    %949 = vmatpush2.bf16.msra.mxu0 0
    %950 = vmatprep.subr.bf16.mxu0 0
    %951 = vmatpush2.bf16.msra.mxu0 0
    %952 = vmatprep.subr.bf16.mxu0 0
    %953 = vmatpush2.bf16.msra.mxu0 0
    %954 = vmatprep.subr.bf16.mxu0 0
    %955 = vmatpush2.bf16.msra.mxu0 0
    %956 = vmatprep.subr.bf16.mxu0 0
    %957 = vmatpush2.bf16.msra.mxu0 0
    %958 = vmatprep.subr.bf16.mxu0 0
    %959 = vmatpush2.bf16.msra.mxu0 0
    %960 = vmatprep.subr.bf16.mxu0 0
    %961 = vmatpush2.bf16.msra.mxu0 0
    %962 = vmatprep.mubr.bf16.mxu0 0
    %963 = vmatmul.mubr.bf16.gmra.mxu0 %v925
    %v964 = vpop.f32.mrf.mxu0
    %v965 = vadd.f32 0.0, %v964
    %v966 = vpop.f32.mrf.mxu0
    %v967 = vpop.f32.mrf.mxu0
    %v968 = vpop.f32.mrf.mxu0
    %969 = vdwg.mxu0
    %970 = vrot.lane.b32.xlu0 %v744, 112
    %v971 = vpop.permute.xlu0 %970
    %972 = vrot.lane.b32.xlu0 %v744, 80
    %v973 = vpop.permute.xlu0 %972
    %v975 = vsel %vm748, %v971, 0
    %v978 = vsel %vm748, %v973, 0
    %980 = vmatprep.subr.bf16.mxu0 0
    %981 = vmatpush1.bf16.xpose.msra.mxu0 0
    %982 = vmatprep.subr.bf16.mxu0 0
    %983 = vmatpush1.bf16.xpose.msra.mxu0 0
    %984 = vmatprep.subr.bf16.mxu0 0
    %985 = vmatpush1.bf16.xpose.msra.mxu0 0
    %986 = vmatprep.subr.bf16.mxu0 0
    %987 = vmatpush1.bf16.xpose.msra.mxu0 0
    %988 = vmatprep.subr.bf16.mxu0 0
    %989 = vmatpush1.bf16.xpose.msra.mxu0 0
    %990 = vmatprep.subr.bf16.mxu0 0
    %991 = vmatpush1.bf16.xpose.msra.mxu0 0
    %992 = vmatprep.subr.bf16.mxu0 0
    %993 = vmatpush1.bf16.xpose.msra.mxu0 0
    %994 = vmatprep.subr.bf16.mxu0 0
    %995 = vmatpush1.bf16.xpose.msra.mxu0 %v978
    %996 = vmatprep.subr.bf16.mxu0 0
    %997 = vmatpush2.bf16.xpose.msra.mxu0 0
    %998 = vmatprep.subr.bf16.mxu0 0
    %999 = vmatpush2.bf16.xpose.msra.mxu0 0
    %1000 = vmatprep.subr.bf16.mxu0 0
    %1001 = vmatpush2.bf16.xpose.msra.mxu0 0
    %1002 = vmatprep.subr.bf16.mxu0 0
    %1003 = vmatpush2.bf16.xpose.msra.mxu0 0
    %1004 = vmatprep.subr.bf16.mxu0 0
    %1005 = vmatpush2.bf16.xpose.msra.mxu0 0
    %1006 = vmatprep.subr.bf16.mxu0 0
    %1007 = vmatpush2.bf16.xpose.msra.mxu0 0
    %1008 = vmatprep.subr.bf16.mxu0 0
    %1009 = vmatpush2.bf16.xpose.msra.mxu0 0
    %1010 = vmatprep.subr.bf16.mxu0 0
    %1011 = vmatpush2.bf16.xpose.msra.mxu0 0
    %1012 = vmatprep.mubr.bf16.mxu0 0
    %1013 = vmatmul.mubr.bf16.gmra.mxu0 %v975
    %v1014 = vpop.f32.mrf.mxu0
    %v1015 = vadd.f32 0.0, %v1014
    %v1016 = vpop.f32.mrf.mxu0
    %v1017 = vpop.f32.mrf.mxu0
    %v1018 = vpop.f32.mrf.mxu0
    %1019 = vdwg.mxu0
    %v1020 = vmul.f32 %v1015, 0.35355338
    %v1021 = vadd.f32 %v1020, %v563
    %v1022 = vsel %vm554, %v1021, -inf
    %1023 = vmax.xlane.f32.xlu0 %v1022
    %v1024 = vpop.xlane.xlu0 %1023
    %v1025 = vsub.f32 %v1021, %v1024
    %v1026 = vmul.f32 %v1025, 1.442695
    %v1027 = vpow.pop %v1026
    %v1028 = vsel %vm554, %v1027, 0.0
    %1029 = vadd.xlane.f32.xlu0 %v1028
    %v1030 = vpop.xlane.xlu0 %1029
    %v1031 = vrcp.pop %v1030
    %v1032 = vmul.f32 %v1027, %v1031
    %v1033 = vpack.c.bf16 %v1032, %v1032
    %1034 = vrot.lane.b32.xlu0 %v744, 48
    %v1035 = vpop.permute.xlu0 %1034
    %v1037 = vsel %vm164, %v1033, 0
    %v1040 = vsel %vm814, %v1035, 0
    %1042 = vmatprep.subr.bf16.mxu0 0
    %1043 = vmatpush1.bf16.msra.mxu0 0
    %1044 = vmatprep.subr.bf16.mxu0 0
    %1045 = vmatpush1.bf16.msra.mxu0 0
    %1046 = vmatprep.subr.bf16.mxu0 0
    %1047 = vmatpush1.bf16.msra.mxu0 0
    %1048 = vmatprep.subr.bf16.mxu0 0
    %1049 = vmatpush1.bf16.msra.mxu0 0
    %1050 = vmatprep.subr.bf16.mxu0 0
    %1051 = vmatpush1.bf16.msra.mxu0 0
    %1052 = vmatprep.subr.bf16.mxu0 0
    %1053 = vmatpush1.bf16.msra.mxu0 0
    %1054 = vmatprep.subr.bf16.mxu0 0
    %1055 = vmatpush1.bf16.msra.mxu0 0
    %1056 = vmatprep.subr.bf16.mxu0 0
    %1057 = vmatpush1.bf16.msra.mxu0 %v1040
    %1058 = vmatprep.subr.bf16.mxu0 0
    %1059 = vmatpush2.bf16.msra.mxu0 0
    %1060 = vmatprep.subr.bf16.mxu0 0
    %1061 = vmatpush2.bf16.msra.mxu0 0
    %1062 = vmatprep.subr.bf16.mxu0 0
    %1063 = vmatpush2.bf16.msra.mxu0 0
    %1064 = vmatprep.subr.bf16.mxu0 0
    %1065 = vmatpush2.bf16.msra.mxu0 0
    %1066 = vmatprep.subr.bf16.mxu0 0
    %1067 = vmatpush2.bf16.msra.mxu0 0
    %1068 = vmatprep.subr.bf16.mxu0 0
    %1069 = vmatpush2.bf16.msra.mxu0 0
    %1070 = vmatprep.subr.bf16.mxu0 0
    %1071 = vmatpush2.bf16.msra.mxu0 0
    %1072 = vmatprep.subr.bf16.mxu0 0
    %1073 = vmatpush2.bf16.msra.mxu0 0
    %1074 = vmatprep.mubr.bf16.mxu0 0
    %1075 = vmatmul.mubr.bf16.gmra.mxu0 %v1037
    %v1076 = vpop.f32.mrf.mxu0
    %v1077 = vadd.f32 0.0, %v1076
    %v1078 = vpop.f32.mrf.mxu0
    %v1079 = vpop.f32.mrf.mxu0
    %v1080 = vpop.f32.mrf.mxu0
    %1081 = vdwg.mxu0
    %1082 = vrot.lane.b32.xlu0 %v744, 104
    %v1083 = vpop.permute.xlu0 %1082
    %1084 = vrot.lane.b32.xlu0 %v744, 72
    %v1085 = vpop.permute.xlu0 %1084
    %v1087 = vsel %vm748, %v1083, 0
    %v1090 = vsel %vm748, %v1085, 0
    %1092 = vmatprep.subr.bf16.mxu0 0
    %1093 = vmatpush1.bf16.xpose.msra.mxu0 0
    %1094 = vmatprep.subr.bf16.mxu0 0
    %1095 = vmatpush1.bf16.xpose.msra.mxu0 0
    %1096 = vmatprep.subr.bf16.mxu0 0
    %1097 = vmatpush1.bf16.xpose.msra.mxu0 0
    %1098 = vmatprep.subr.bf16.mxu0 0
    %1099 = vmatpush1.bf16.xpose.msra.mxu0 0
    %1100 = vmatprep.subr.bf16.mxu0 0
    %1101 = vmatpush1.bf16.xpose.msra.mxu0 0
    %1102 = vmatprep.subr.bf16.mxu0 0
    %1103 = vmatpush1.bf16.xpose.msra.mxu0 0
    %1104 = vmatprep.subr.bf16.mxu0 0
    %1105 = vmatpush1.bf16.xpose.msra.mxu0 0
    %1106 = vmatprep.subr.bf16.mxu0 0
    %1107 = vmatpush1.bf16.xpose.msra.mxu0 %v1090
    %1108 = vmatprep.subr.bf16.mxu0 0
    %1109 = vmatpush2.bf16.xpose.msra.mxu0 0
    %1110 = vmatprep.subr.bf16.mxu0 0
    %1111 = vmatpush2.bf16.xpose.msra.mxu0 0
    %1112 = vmatprep.subr.bf16.mxu0 0
    %1113 = vmatpush2.bf16.xpose.msra.mxu0 0
    %1114 = vmatprep.subr.bf16.mxu0 0
    %1115 = vmatpush2.bf16.xpose.msra.mxu0 0
    %1116 = vmatprep.subr.bf16.mxu0 0
    %1117 = vmatpush2.bf16.xpose.msra.mxu0 0
    %1118 = vmatprep.subr.bf16.mxu0 0
    %1119 = vmatpush2.bf16.xpose.msra.mxu0 0
    %1120 = vmatprep.subr.bf16.mxu0 0
    %1121 = vmatpush2.bf16.xpose.msra.mxu0 0
    %1122 = vmatprep.subr.bf16.mxu0 0
    %1123 = vmatpush2.bf16.xpose.msra.mxu0 0
    %1124 = vmatprep.mubr.bf16.mxu0 0
    %1125 = vmatmul.mubr.bf16.gmra.mxu0 %v1087
    %v1126 = vpop.f32.mrf.mxu0
    %v1127 = vadd.f32 0.0, %v1126
    %v1128 = vpop.f32.mrf.mxu0
    %v1129 = vpop.f32.mrf.mxu0
    %v1130 = vpop.f32.mrf.mxu0
    %1131 = vdwg.mxu0
    %v1132 = vmul.f32 %v1127, 0.35355338
    %v1133 = vadd.f32 %v1132, %v563
    %v1134 = vsel %vm554, %v1133, -inf
    %1135 = vmax.xlane.f32.xlu0 %v1134
    %v1136 = vpop.xlane.xlu0 %1135
    %v1137 = vsub.f32 %v1133, %v1136
    %v1138 = vmul.f32 %v1137, 1.442695
    %v1139 = vpow.pop %v1138
    %v1140 = vsel %vm554, %v1139, 0.0
    %1141 = vadd.xlane.f32.xlu0 %v1140
    %v1142 = vpop.xlane.xlu0 %1141
    %v1143 = vrcp.pop %v1142
    %v1144 = vmul.f32 %v1139, %v1143
    %v1145 = vpack.c.bf16 %v1144, %v1144
    %1146 = vrot.lane.b32.xlu0 %v744, 40
    %v1147 = vpop.permute.xlu0 %1146
    %v1149 = vsel %vm164, %v1145, 0
    %v1152 = vsel %vm814, %v1147, 0
    %1154 = vmatprep.subr.bf16.mxu0 0
    %1155 = vmatpush1.bf16.msra.mxu0 0
    %1156 = vmatprep.subr.bf16.mxu0 0
    %1157 = vmatpush1.bf16.msra.mxu0 0
    %1158 = vmatprep.subr.bf16.mxu0 0
    %1159 = vmatpush1.bf16.msra.mxu0 0
    %1160 = vmatprep.subr.bf16.mxu0 0
    %1161 = vmatpush1.bf16.msra.mxu0 0
    %1162 = vmatprep.subr.bf16.mxu0 0
    %1163 = vmatpush1.bf16.msra.mxu0 0
    %1164 = vmatprep.subr.bf16.mxu0 0
    %1165 = vmatpush1.bf16.msra.mxu0 0
    %1166 = vmatprep.subr.bf16.mxu0 0
    %1167 = vmatpush1.bf16.msra.mxu0 0
    %1168 = vmatprep.subr.bf16.mxu0 0
    %1169 = vmatpush1.bf16.msra.mxu0 %v1152
    %1170 = vmatprep.subr.bf16.mxu0 0
    %1171 = vmatpush2.bf16.msra.mxu0 0
    %1172 = vmatprep.subr.bf16.mxu0 0
    %1173 = vmatpush2.bf16.msra.mxu0 0
    %1174 = vmatprep.subr.bf16.mxu0 0
    %1175 = vmatpush2.bf16.msra.mxu0 0
    %1176 = vmatprep.subr.bf16.mxu0 0
    %1177 = vmatpush2.bf16.msra.mxu0 0
    %1178 = vmatprep.subr.bf16.mxu0 0
    %1179 = vmatpush2.bf16.msra.mxu0 0
    %1180 = vmatprep.subr.bf16.mxu0 0
    %1181 = vmatpush2.bf16.msra.mxu0 0
    %1182 = vmatprep.subr.bf16.mxu0 0
    %1183 = vmatpush2.bf16.msra.mxu0 0
    %1184 = vmatprep.subr.bf16.mxu0 0
    %1185 = vmatpush2.bf16.msra.mxu0 0
    %1186 = vmatprep.mubr.bf16.mxu0 0
    %1187 = vmatmul.mubr.bf16.gmra.mxu0 %v1149
    %v1188 = vpop.f32.mrf.mxu0
    %v1189 = vadd.f32 0.0, %v1188
    %v1190 = vpop.f32.mrf.mxu0
    %v1191 = vpop.f32.mrf.mxu0
    %v1192 = vpop.f32.mrf.mxu0
    %1193 = vdwg.mxu0
    %1195 = vrot.lane.b32.xlu0 %v965, 8
    %v1196 = vpop.permute.xlu0 %1195
    %1199 = vrot.lane.b32.xlu0 %v1077, 16
    %v1200 = vpop.permute.xlu0 %1199
    %1203 = vrot.lane.b32.xlu0 %v1189, 24
    %v1204 = vpop.permute.xlu0 %1203
    %v1206 = vsel %vm748, %v853, %v1196
    %v1207 = vsel %vm67, %v1206, %v1200
    %vm1208 = vcmask 195584
    %v1209 = vsel %vm1208, %v1207, %v1204
    %v1210 = vrot.slane %v744, 2
    %1211 = vrot.lane.b32.xlu0 %v1210, 96
    %v1212 = vpop.permute.xlu0 %1211
    %v1214 = vsel %vm748, %v1210, 0
    %v1217 = vsel %vm748, %v1212, 0
    %1219 = vmatprep.subr.bf16.mxu0 0
    %1220 = vmatpush1.bf16.xpose.msra.mxu0 0
    %1221 = vmatprep.subr.bf16.mxu0 0
    %1222 = vmatpush1.bf16.xpose.msra.mxu0 0
    %1223 = vmatprep.subr.bf16.mxu0 0
    %1224 = vmatpush1.bf16.xpose.msra.mxu0 0
    %1225 = vmatprep.subr.bf16.mxu0 0
    %1226 = vmatpush1.bf16.xpose.msra.mxu0 0
    %1227 = vmatprep.subr.bf16.mxu0 0
    %1228 = vmatpush1.bf16.xpose.msra.mxu0 0
    %1229 = vmatprep.subr.bf16.mxu0 0
    %1230 = vmatpush1.bf16.xpose.msra.mxu0 0
    %1231 = vmatprep.subr.bf16.mxu0 0
    %1232 = vmatpush1.bf16.xpose.msra.mxu0 0
    %1233 = vmatprep.subr.bf16.mxu0 0
    %1234 = vmatpush1.bf16.xpose.msra.mxu0 %v1217
    %1235 = vmatprep.subr.bf16.mxu0 0
    %1236 = vmatpush2.bf16.xpose.msra.mxu0 0
    %1237 = vmatprep.subr.bf16.mxu0 0
    %1238 = vmatpush2.bf16.xpose.msra.mxu0 0
    %1239 = vmatprep.subr.bf16.mxu0 0
    %1240 = vmatpush2.bf16.xpose.msra.mxu0 0
    %1241 = vmatprep.subr.bf16.mxu0 0
    %1242 = vmatpush2.bf16.xpose.msra.mxu0 0
    %1243 = vmatprep.subr.bf16.mxu0 0
    %1244 = vmatpush2.bf16.xpose.msra.mxu0 0
    %1245 = vmatprep.subr.bf16.mxu0 0
    %1246 = vmatpush2.bf16.xpose.msra.mxu0 0
    %1247 = vmatprep.subr.bf16.mxu0 0
    %1248 = vmatpush2.bf16.xpose.msra.mxu0 0
    %1249 = vmatprep.subr.bf16.mxu0 0
    %1250 = vmatpush2.bf16.xpose.msra.mxu0 0
    %1251 = vmatprep.mubr.bf16.mxu0 0
    %1252 = vmatmul.mubr.bf16.gmra.mxu0 %v1214
    %v1253 = vpop.f32.mrf.mxu0
    %v1254 = vadd.f32 0.0, %v1253
    %v1255 = vpop.f32.mrf.mxu0
    %v1256 = vpop.f32.mrf.mxu0
    %v1257 = vpop.f32.mrf.mxu0
    %1258 = vdwg.mxu0
    %v1259 = vmul.f32 %v1254, 0.35355338
    %v1261 = vrot.slane %v678, 4
    %v1263 = vadd.f32 %v1259, %v1261
    %v1264 = vsel %vm554, %v1263, -inf
    %1265 = vmax.xlane.f32.xlu0 %v1264
    %v1266 = vpop.xlane.xlu0 %1265
    %v1267 = vsub.f32 %v1263, %v1266
    %v1268 = vmul.f32 %v1267, 1.442695
    %v1269 = vpow.pop %v1268
    %v1270 = vsel %vm554, %v1269, 0.0
    %1271 = vadd.xlane.f32.xlu0 %v1270
    %v1272 = vpop.xlane.xlu0 %1271
    %v1273 = vrcp.pop %v1272
    %v1274 = vmul.f32 %v1269, %v1273
    %v1275 = vpack.c.bf16 %v1274, %v1274
    %1276 = vrot.lane.b32.xlu0 %v1210, 64
    %v1277 = vpop.permute.xlu0 %1276
    %v1279 = vsel %vm164, %v1275, 0
    %v1282 = vsel %vm814, %v1277, 0
    %1284 = vmatprep.subr.bf16.mxu0 0
    %1285 = vmatpush1.bf16.msra.mxu0 0
    %1286 = vmatprep.subr.bf16.mxu0 0
    %1287 = vmatpush1.bf16.msra.mxu0 0
    %1288 = vmatprep.subr.bf16.mxu0 0
    %1289 = vmatpush1.bf16.msra.mxu0 0
    %1290 = vmatprep.subr.bf16.mxu0 0
    %1291 = vmatpush1.bf16.msra.mxu0 0
    %1292 = vmatprep.subr.bf16.mxu0 0
    %1293 = vmatpush1.bf16.msra.mxu0 0
    %1294 = vmatprep.subr.bf16.mxu0 0
    %1295 = vmatpush1.bf16.msra.mxu0 0
    %1296 = vmatprep.subr.bf16.mxu0 0
    %1297 = vmatpush1.bf16.msra.mxu0 0
    %1298 = vmatprep.subr.bf16.mxu0 0
    %1299 = vmatpush1.bf16.msra.mxu0 %v1282
    %1300 = vmatprep.subr.bf16.mxu0 0
    %1301 = vmatpush2.bf16.msra.mxu0 0
    %1302 = vmatprep.subr.bf16.mxu0 0
    %1303 = vmatpush2.bf16.msra.mxu0 0
    %1304 = vmatprep.subr.bf16.mxu0 0
    %1305 = vmatpush2.bf16.msra.mxu0 0
    %1306 = vmatprep.subr.bf16.mxu0 0
    %1307 = vmatpush2.bf16.msra.mxu0 0
    %1308 = vmatprep.subr.bf16.mxu0 0
    %1309 = vmatpush2.bf16.msra.mxu0 0
    %1310 = vmatprep.subr.bf16.mxu0 0
    %1311 = vmatpush2.bf16.msra.mxu0 0
    %1312 = vmatprep.subr.bf16.mxu0 0
    %1313 = vmatpush2.bf16.msra.mxu0 0
    %1314 = vmatprep.subr.bf16.mxu0 0
    %1315 = vmatpush2.bf16.msra.mxu0 0
    %1316 = vmatprep.mubr.bf16.mxu0 0
    %1317 = vmatmul.mubr.bf16.gmra.mxu0 %v1279
    %v1318 = vpop.f32.mrf.mxu0
    %v1319 = vadd.f32 0.0, %v1318
    %v1320 = vpop.f32.mrf.mxu0
    %v1321 = vpop.f32.mrf.mxu0
    %v1322 = vpop.f32.mrf.mxu0
    %1323 = vdwg.mxu0
    %1324 = vrot.lane.b32.xlu0 %v1210, 120
    %v1325 = vpop.permute.xlu0 %1324
    %1326 = vrot.lane.b32.xlu0 %v1210, 88
    %v1327 = vpop.permute.xlu0 %1326
    %v1329 = vsel %vm748, %v1325, 0
    %v1332 = vsel %vm748, %v1327, 0
    %1334 = vmatprep.subr.bf16.mxu0 0
    %1335 = vmatpush1.bf16.xpose.msra.mxu0 0
    %1336 = vmatprep.subr.bf16.mxu0 0
    %1337 = vmatpush1.bf16.xpose.msra.mxu0 0
    %1338 = vmatprep.subr.bf16.mxu0 0
    %1339 = vmatpush1.bf16.xpose.msra.mxu0 0
    %1340 = vmatprep.subr.bf16.mxu0 0
    %1341 = vmatpush1.bf16.xpose.msra.mxu0 0
    %1342 = vmatprep.subr.bf16.mxu0 0
    %1343 = vmatpush1.bf16.xpose.msra.mxu0 0
    %1344 = vmatprep.subr.bf16.mxu0 0
    %1345 = vmatpush1.bf16.xpose.msra.mxu0 0
    %1346 = vmatprep.subr.bf16.mxu0 0
    %1347 = vmatpush1.bf16.xpose.msra.mxu0 0
    %1348 = vmatprep.subr.bf16.mxu0 0
    %1349 = vmatpush1.bf16.xpose.msra.mxu0 %v1332
    %1350 = vmatprep.subr.bf16.mxu0 0
    %1351 = vmatpush2.bf16.xpose.msra.mxu0 0
    %1352 = vmatprep.subr.bf16.mxu0 0
    %1353 = vmatpush2.bf16.xpose.msra.mxu0 0
    %1354 = vmatprep.subr.bf16.mxu0 0
    %1355 = vmatpush2.bf16.xpose.msra.mxu0 0
    %1356 = vmatprep.subr.bf16.mxu0 0
    %1357 = vmatpush2.bf16.xpose.msra.mxu0 0
    %1358 = vmatprep.subr.bf16.mxu0 0
    %1359 = vmatpush2.bf16.xpose.msra.mxu0 0
    %1360 = vmatprep.subr.bf16.mxu0 0
    %1361 = vmatpush2.bf16.xpose.msra.mxu0 0
    %1362 = vmatprep.subr.bf16.mxu0 0
    %1363 = vmatpush2.bf16.xpose.msra.mxu0 0
    %1364 = vmatprep.subr.bf16.mxu0 0
    %1365 = vmatpush2.bf16.xpose.msra.mxu0 0
    %1366 = vmatprep.mubr.bf16.mxu0 0
    %1367 = vmatmul.mubr.bf16.gmra.mxu0 %v1329
    %v1368 = vpop.f32.mrf.mxu0
    %v1369 = vadd.f32 0.0, %v1368
    %v1370 = vpop.f32.mrf.mxu0
    %v1371 = vpop.f32.mrf.mxu0
    %v1372 = vpop.f32.mrf.mxu0
    %1373 = vdwg.mxu0
    %v1374 = vmul.f32 %v1369, 0.35355338
    %v1375 = vadd.f32 %v1374, %v1261
    %v1376 = vsel %vm554, %v1375, -inf
    %1377 = vmax.xlane.f32.xlu0 %v1376
    %v1378 = vpop.xlane.xlu0 %1377
    %v1379 = vsub.f32 %v1375, %v1378
    %v1380 = vmul.f32 %v1379, 1.442695
    %v1381 = vpow.pop %v1380
    %v1382 = vsel %vm554, %v1381, 0.0
    %1383 = vadd.xlane.f32.xlu0 %v1382
    %v1384 = vpop.xlane.xlu0 %1383
    %v1385 = vrcp.pop %v1384
    %v1386 = vmul.f32 %v1381, %v1385
    %v1387 = vpack.c.bf16 %v1386, %v1386
    %1388 = vrot.lane.b32.xlu0 %v1210, 56
    %v1389 = vpop.permute.xlu0 %1388
    %v1391 = vsel %vm164, %v1387, 0
    %v1394 = vsel %vm814, %v1389, 0
    %1396 = vmatprep.subr.bf16.mxu0 0
    %1397 = vmatpush1.bf16.msra.mxu0 0
    %1398 = vmatprep.subr.bf16.mxu0 0
    %1399 = vmatpush1.bf16.msra.mxu0 0
    %1400 = vmatprep.subr.bf16.mxu0 0
    %1401 = vmatpush1.bf16.msra.mxu0 0
    %1402 = vmatprep.subr.bf16.mxu0 0
    %1403 = vmatpush1.bf16.msra.mxu0 0
    %1404 = vmatprep.subr.bf16.mxu0 0
    %1405 = vmatpush1.bf16.msra.mxu0 0
    %1406 = vmatprep.subr.bf16.mxu0 0
    %1407 = vmatpush1.bf16.msra.mxu0 0
    %1408 = vmatprep.subr.bf16.mxu0 0
    %1409 = vmatpush1.bf16.msra.mxu0 0
    %1410 = vmatprep.subr.bf16.mxu0 0
    %1411 = vmatpush1.bf16.msra.mxu0 %v1394
    %1412 = vmatprep.subr.bf16.mxu0 0
    %1413 = vmatpush2.bf16.msra.mxu0 0
    %1414 = vmatprep.subr.bf16.mxu0 0
    %1415 = vmatpush2.bf16.msra.mxu0 0
    %1416 = vmatprep.subr.bf16.mxu0 0
    %1417 = vmatpush2.bf16.msra.mxu0 0
    %1418 = vmatprep.subr.bf16.mxu0 0
    %1419 = vmatpush2.bf16.msra.mxu0 0
    %1420 = vmatprep.subr.bf16.mxu0 0
    %1421 = vmatpush2.bf16.msra.mxu0 0
    %1422 = vmatprep.subr.bf16.mxu0 0
    %1423 = vmatpush2.bf16.msra.mxu0 0
    %1424 = vmatprep.subr.bf16.mxu0 0
    %1425 = vmatpush2.bf16.msra.mxu0 0
    %1426 = vmatprep.subr.bf16.mxu0 0
    %1427 = vmatpush2.bf16.msra.mxu0 0
    %1428 = vmatprep.mubr.bf16.mxu0 0
    %1429 = vmatmul.mubr.bf16.gmra.mxu0 %v1391
    %v1430 = vpop.f32.mrf.mxu0
    %v1431 = vadd.f32 0.0, %v1430
    %v1432 = vpop.f32.mrf.mxu0
    %v1433 = vpop.f32.mrf.mxu0
    %v1434 = vpop.f32.mrf.mxu0
    %1435 = vdwg.mxu0
    %1436 = vrot.lane.b32.xlu0 %v1210, 112
    %v1437 = vpop.permute.xlu0 %1436
    %1438 = vrot.lane.b32.xlu0 %v1210, 80
    %v1439 = vpop.permute.xlu0 %1438
    %v1441 = vsel %vm748, %v1437, 0
    %v1444 = vsel %vm748, %v1439, 0
    %1446 = vmatprep.subr.bf16.mxu0 0
    %1447 = vmatpush1.bf16.xpose.msra.mxu0 0
    %1448 = vmatprep.subr.bf16.mxu0 0
    %1449 = vmatpush1.bf16.xpose.msra.mxu0 0
    %1450 = vmatprep.subr.bf16.mxu0 0
    %1451 = vmatpush1.bf16.xpose.msra.mxu0 0
    %1452 = vmatprep.subr.bf16.mxu0 0
    %1453 = vmatpush1.bf16.xpose.msra.mxu0 0
    %1454 = vmatprep.subr.bf16.mxu0 0
    %1455 = vmatpush1.bf16.xpose.msra.mxu0 0
    %1456 = vmatprep.subr.bf16.mxu0 0
    %1457 = vmatpush1.bf16.xpose.msra.mxu0 0
    %1458 = vmatprep.subr.bf16.mxu0 0
    %1459 = vmatpush1.bf16.xpose.msra.mxu0 0
    %1460 = vmatprep.subr.bf16.mxu0 0
    %1461 = vmatpush1.bf16.xpose.msra.mxu0 %v1444
    %1462 = vmatprep.subr.bf16.mxu0 0
    %1463 = vmatpush2.bf16.xpose.msra.mxu0 0
    %1464 = vmatprep.subr.bf16.mxu0 0
    %1465 = vmatpush2.bf16.xpose.msra.mxu0 0
    %1466 = vmatprep.subr.bf16.mxu0 0
    %1467 = vmatpush2.bf16.xpose.msra.mxu0 0
    %1468 = vmatprep.subr.bf16.mxu0 0
    %1469 = vmatpush2.bf16.xpose.msra.mxu0 0
    %1470 = vmatprep.subr.bf16.mxu0 0
    %1471 = vmatpush2.bf16.xpose.msra.mxu0 0
    %1472 = vmatprep.subr.bf16.mxu0 0
    %1473 = vmatpush2.bf16.xpose.msra.mxu0 0
    %1474 = vmatprep.subr.bf16.mxu0 0
    %1475 = vmatpush2.bf16.xpose.msra.mxu0 0
    %1476 = vmatprep.subr.bf16.mxu0 0
    %1477 = vmatpush2.bf16.xpose.msra.mxu0 0
    %1478 = vmatprep.mubr.bf16.mxu0 0
    %1479 = vmatmul.mubr.bf16.gmra.mxu0 %v1441
    %v1480 = vpop.f32.mrf.mxu0
    %v1481 = vadd.f32 0.0, %v1480
    %v1482 = vpop.f32.mrf.mxu0
    %v1483 = vpop.f32.mrf.mxu0
    %v1484 = vpop.f32.mrf.mxu0
    %1485 = vdwg.mxu0
    %v1486 = vmul.f32 %v1481, 0.35355338
    %v1487 = vadd.f32 %v1486, %v1261
    %v1488 = vsel %vm554, %v1487, -inf
    %1489 = vmax.xlane.f32.xlu0 %v1488
    %v1490 = vpop.xlane.xlu0 %1489
    %v1491 = vsub.f32 %v1487, %v1490
    %v1492 = vmul.f32 %v1491, 1.442695
    %v1493 = vpow.pop %v1492
    %v1494 = vsel %vm554, %v1493, 0.0
    %1495 = vadd.xlane.f32.xlu0 %v1494
    %v1496 = vpop.xlane.xlu0 %1495
    %v1497 = vrcp.pop %v1496
    %v1498 = vmul.f32 %v1493, %v1497
    %v1499 = vpack.c.bf16 %v1498, %v1498
    %1500 = vrot.lane.b32.xlu0 %v1210, 48
    %v1501 = vpop.permute.xlu0 %1500
    %v1503 = vsel %vm164, %v1499, 0
    %v1506 = vsel %vm814, %v1501, 0
    %1508 = vmatprep.subr.bf16.mxu0 0
    %1509 = vmatpush1.bf16.msra.mxu0 0
    %1510 = vmatprep.subr.bf16.mxu0 0
    %1511 = vmatpush1.bf16.msra.mxu0 0
    %1512 = vmatprep.subr.bf16.mxu0 0
    %1513 = vmatpush1.bf16.msra.mxu0 0
    %1514 = vmatprep.subr.bf16.mxu0 0
    %1515 = vmatpush1.bf16.msra.mxu0 0
    %1516 = vmatprep.subr.bf16.mxu0 0
    %1517 = vmatpush1.bf16.msra.mxu0 0
    %1518 = vmatprep.subr.bf16.mxu0 0
    %1519 = vmatpush1.bf16.msra.mxu0 0
    %1520 = vmatprep.subr.bf16.mxu0 0
    %1521 = vmatpush1.bf16.msra.mxu0 0
    %1522 = vmatprep.subr.bf16.mxu0 0
    %1523 = vmatpush1.bf16.msra.mxu0 %v1506
    %1524 = vmatprep.subr.bf16.mxu0 0
    %1525 = vmatpush2.bf16.msra.mxu0 0
    %1526 = vmatprep.subr.bf16.mxu0 0
    %1527 = vmatpush2.bf16.msra.mxu0 0
    %1528 = vmatprep.subr.bf16.mxu0 0
    %1529 = vmatpush2.bf16.msra.mxu0 0
    %1530 = vmatprep.subr.bf16.mxu0 0
    %1531 = vmatpush2.bf16.msra.mxu0 0
    %1532 = vmatprep.subr.bf16.mxu0 0
    %1533 = vmatpush2.bf16.msra.mxu0 0
    %1534 = vmatprep.subr.bf16.mxu0 0
    %1535 = vmatpush2.bf16.msra.mxu0 0
    %1536 = vmatprep.subr.bf16.mxu0 0
    %1537 = vmatpush2.bf16.msra.mxu0 0
    %1538 = vmatprep.subr.bf16.mxu0 0
    %1539 = vmatpush2.bf16.msra.mxu0 0
    %1540 = vmatprep.mubr.bf16.mxu0 0
    %1541 = vmatmul.mubr.bf16.gmra.mxu0 %v1503
    %v1542 = vpop.f32.mrf.mxu0
    %v1543 = vadd.f32 0.0, %v1542
    %v1544 = vpop.f32.mrf.mxu0
    %v1545 = vpop.f32.mrf.mxu0
    %v1546 = vpop.f32.mrf.mxu0
    %1547 = vdwg.mxu0
    %1548 = vrot.lane.b32.xlu0 %v1210, 104
    %v1549 = vpop.permute.xlu0 %1548
    %1550 = vrot.lane.b32.xlu0 %v1210, 72
    %v1551 = vpop.permute.xlu0 %1550
    %v1553 = vsel %vm748, %v1549, 0
    %v1556 = vsel %vm748, %v1551, 0
    %1558 = vmatprep.subr.bf16.mxu0 0
    %1559 = vmatpush1.bf16.xpose.msra.mxu0 0
    %1560 = vmatprep.subr.bf16.mxu0 0
    %1561 = vmatpush1.bf16.xpose.msra.mxu0 0
    %1562 = vmatprep.subr.bf16.mxu0 0
    %1563 = vmatpush1.bf16.xpose.msra.mxu0 0
    %1564 = vmatprep.subr.bf16.mxu0 0
    %1565 = vmatpush1.bf16.xpose.msra.mxu0 0
    %1566 = vmatprep.subr.bf16.mxu0 0
    %1567 = vmatpush1.bf16.xpose.msra.mxu0 0
    %1568 = vmatprep.subr.bf16.mxu0 0
    %1569 = vmatpush1.bf16.xpose.msra.mxu0 0
    %1570 = vmatprep.subr.bf16.mxu0 0
    %1571 = vmatpush1.bf16.xpose.msra.mxu0 0
    %1572 = vmatprep.subr.bf16.mxu0 0
    %1573 = vmatpush1.bf16.xpose.msra.mxu0 %v1556
    %1574 = vmatprep.subr.bf16.mxu0 0
    %1575 = vmatpush2.bf16.xpose.msra.mxu0 0
    %1576 = vmatprep.subr.bf16.mxu0 0
    %1577 = vmatpush2.bf16.xpose.msra.mxu0 0
    %1578 = vmatprep.subr.bf16.mxu0 0
    %1579 = vmatpush2.bf16.xpose.msra.mxu0 0
    %1580 = vmatprep.subr.bf16.mxu0 0
    %1581 = vmatpush2.bf16.xpose.msra.mxu0 0
    %1582 = vmatprep.subr.bf16.mxu0 0
    %1583 = vmatpush2.bf16.xpose.msra.mxu0 0
    %1584 = vmatprep.subr.bf16.mxu0 0
    %1585 = vmatpush2.bf16.xpose.msra.mxu0 0
    %1586 = vmatprep.subr.bf16.mxu0 0
    %1587 = vmatpush2.bf16.xpose.msra.mxu0 0
    %1588 = vmatprep.subr.bf16.mxu0 0
    %1589 = vmatpush2.bf16.xpose.msra.mxu0 0
    %1590 = vmatprep.mubr.bf16.mxu0 0
    %1591 = vmatmul.mubr.bf16.gmra.mxu0 %v1553
    %v1592 = vpop.f32.mrf.mxu0
    %v1593 = vadd.f32 0.0, %v1592
    %v1594 = vpop.f32.mrf.mxu0
    %v1595 = vpop.f32.mrf.mxu0
    %v1596 = vpop.f32.mrf.mxu0
    %1597 = vdwg.mxu0
    %v1598 = vmul.f32 %v1593, 0.35355338
    %v1599 = vadd.f32 %v1598, %v1261
    %v1600 = vsel %vm554, %v1599, -inf
    %1601 = vmax.xlane.f32.xlu0 %v1600
    %v1602 = vpop.xlane.xlu0 %1601
    %v1603 = vsub.f32 %v1599, %v1602
    %v1604 = vmul.f32 %v1603, 1.442695
    %v1605 = vpow.pop %v1604
    %v1606 = vsel %vm554, %v1605, 0.0
    %1607 = vadd.xlane.f32.xlu0 %v1606
    %v1608 = vpop.xlane.xlu0 %1607
    %v1609 = vrcp.pop %v1608
    %v1610 = vmul.f32 %v1605, %v1609
    %v1611 = vpack.c.bf16 %v1610, %v1610
    %1612 = vrot.lane.b32.xlu0 %v1210, 40
    %v1613 = vpop.permute.xlu0 %1612
    %v1615 = vsel %vm164, %v1611, 0
    %v1618 = vsel %vm814, %v1613, 0
    %1620 = vmatprep.subr.bf16.mxu0 0
    %1621 = vmatpush1.bf16.msra.mxu0 0
    %1622 = vmatprep.subr.bf16.mxu0 0
    %1623 = vmatpush1.bf16.msra.mxu0 0
    %1624 = vmatprep.subr.bf16.mxu0 0
    %1625 = vmatpush1.bf16.msra.mxu0 0
    %1626 = vmatprep.subr.bf16.mxu0 0
    %1627 = vmatpush1.bf16.msra.mxu0 0
    %1628 = vmatprep.subr.bf16.mxu0 0
    %1629 = vmatpush1.bf16.msra.mxu0 0
    %1630 = vmatprep.subr.bf16.mxu0 0
    %1631 = vmatpush1.bf16.msra.mxu0 0
    %1632 = vmatprep.subr.bf16.mxu0 0
    %1633 = vmatpush1.bf16.msra.mxu0 0
    %1634 = vmatprep.subr.bf16.mxu0 0
    %1635 = vmatpush1.bf16.msra.mxu0 %v1618
    %1636 = vmatprep.subr.bf16.mxu0 0
    %1637 = vmatpush2.bf16.msra.mxu0 0
    %1638 = vmatprep.subr.bf16.mxu0 0
    %1639 = vmatpush2.bf16.msra.mxu0 0
    %1640 = vmatprep.subr.bf16.mxu0 0
    %1641 = vmatpush2.bf16.msra.mxu0 0
    %1642 = vmatprep.subr.bf16.mxu0 0
    %1643 = vmatpush2.bf16.msra.mxu0 0
    %1644 = vmatprep.subr.bf16.mxu0 0
    %1645 = vmatpush2.bf16.msra.mxu0 0
    %1646 = vmatprep.subr.bf16.mxu0 0
    %1647 = vmatpush2.bf16.msra.mxu0 0
    %1648 = vmatprep.subr.bf16.mxu0 0
    %1649 = vmatpush2.bf16.msra.mxu0 0
    %1650 = vmatprep.subr.bf16.mxu0 0
    %1651 = vmatpush2.bf16.msra.mxu0 0
    %1652 = vmatprep.mubr.bf16.mxu0 0
    %1653 = vmatmul.mubr.bf16.gmra.mxu0 %v1615
    %v1654 = vpop.f32.mrf.mxu0
    %v1655 = vadd.f32 0.0, %v1654
    %v1656 = vpop.f32.mrf.mxu0
    %v1657 = vpop.f32.mrf.mxu0
    %v1658 = vpop.f32.mrf.mxu0
    %1659 = vdwg.mxu0
    %1661 = vrot.lane.b32.xlu0 %v1431, 8
    %v1662 = vpop.permute.xlu0 %1661
    %1665 = vrot.lane.b32.xlu0 %v1543, 16
    %v1666 = vpop.permute.xlu0 %1665
    %1669 = vrot.lane.b32.xlu0 %v1655, 24
    %v1670 = vpop.permute.xlu0 %1669
    %v1672 = vsel %vm748, %v1319, %v1662
    %v1673 = vsel %vm67, %v1672, %v1666
    %v1674 = vsel %vm1208, %v1673, %v1670
    %v1676 = vrot.slane %v1674, 4
    %vm1678 = vcmask 1043456
    %v1679 = vsel %vm1678, %v1209, %v1676
    %v1680 = vpack.c.bf16 %v1679, %v1679
    %v1681 = vld [vmem:[#allocation7 + $0x7] sm:$0x1]
    %v1682 = vlaneseq
    %v1683 = vshrl.u32 %v1682, 7
    %v1684 = vsub.s32 0, %v1683
    %v1685 = vrot.slane %v1681, %v1684
    %1686 = vrot.lane.b32.xlu0 %v697, 32
    %v1687 = vpop.permute.xlu0 %1686
    %1688 = vrot.lane.b32.xlu0 %v698, 32
    %v1689 = vpop.permute.xlu0 %1688
    %v1693 = vsel %vm262, %v1680, 0
    %1695 = vmatprep.subr.bf16.mxu0 0
    %1696 = vmatpush1.bf16.msra.mxu0 0
    %1697 = vmatprep.subr.bf16.mxu0 0
    %1698 = vmatpush1.bf16.msra.mxu0 0
    %1699 = vmatprep.subr.bf16.mxu0 0
    %1700 = vmatpush1.bf16.msra.mxu0 0
    %1701 = vmatprep.subr.bf16.mxu0 0
    %1702 = vmatpush1.bf16.msra.mxu0 0
    %1703 = vmatprep.subr.bf16.mxu0 0
    %1704 = vmatpush1.bf16.msra.mxu0 0
    %1705 = vmatprep.subr.bf16.mxu0 0
    %1706 = vmatpush1.bf16.msra.mxu0 0
    %1707 = vmatprep.subr.bf16.mxu0 0
    %1708 = vmatpush1.bf16.msra.mxu0 %v1689
    %1709 = vmatprep.subr.bf16.mxu0 0
    %1710 = vmatpush1.bf16.msra.mxu0 %v1687
    %1711 = vmatprep.subr.bf16.mxu0 0
    %1712 = vmatpush2.bf16.msra.mxu0 0
    %1713 = vmatprep.subr.bf16.mxu0 0
    %1714 = vmatpush2.bf16.msra.mxu0 0
    %1715 = vmatprep.subr.bf16.mxu0 0
    %1716 = vmatpush2.bf16.msra.mxu0 0
    %1717 = vmatprep.subr.bf16.mxu0 0
    %1718 = vmatpush2.bf16.msra.mxu0 0
    %1719 = vmatprep.subr.bf16.mxu0 0
    %1720 = vmatpush2.bf16.msra.mxu0 0
    %1721 = vmatprep.subr.bf16.mxu0 0
    %1722 = vmatpush2.bf16.msra.mxu0 0
    %1723 = vmatprep.subr.bf16.mxu0 0
    %1724 = vmatpush2.bf16.msra.mxu0 0
    %1725 = vmatprep.subr.bf16.mxu0 0
    %1726 = vmatpush2.bf16.msra.mxu0 0
    %1727 = vmatprep.mubr.bf16.mxu0 0
    %1728 = vmatmul.mubr.bf16.gmra.mxu0 %v1693
    %v1729 = vpop.f32.mrf.mxu0
    %v1730 = vadd.f32 %v1685, %v1729
    %v1731 = vpop.f32.mrf.mxu0
    %v1732 = vpop.f32.mrf.mxu0
    %v1733 = vpop.f32.mrf.mxu0
    %1734 = vdwg.mxu0
    %v1735 = vadd.f32 %v342, %v1730
    %v1736 = vld [vmem:[#allocation7 + $0xa] sm:$0x1]
    %v1737 = vld [vmem:[#allocation7 + $0xb] sm:$0x1]
    %v1738 = vsel %vm262, %v1735, 0.0
    %1739 = vadd.xlane.f32.xlu0 %v1738
    %v1740 = vpop.xlane.xlu0 %1739
    %v1741 = vrcp.pop 32.0
    %v1742 = vmul.f32 %v1740, %v1741
    %v1743 = vsub.f32 %v1735, %v1742
    %v1744 = vmul.f32 %v1743, %v1743
    %v1745 = vsel %vm262, %v1744, 0.0
    %1746 = vadd.xlane.f32.xlu0 %v1745
    %v1747 = vpop.xlane.xlu0 %1746
    %v1748 = vmul.f32 %v1747, %v1741
    %v1749 = vadd.f32 %v1748, 1e-05
    %v1750 = vrsqrt.pop %v1749
    %v1751 = vmul.f32 %v1743, %v1750
    %v1752 = vlaneseq
    %v1753 = vshrl.u32 %v1752, 7
    %v1754 = vsub.s32 0, %v1753
    %v1755 = vrot.slane %v1736, %v1754
    %v1756 = vmul.f32 %v1751, %v1755
    %v1757 = vlaneseq
    %v1758 = vshrl.u32 %v1757, 7
    %v1759 = vsub.s32 0, %v1758
    %v1760 = vrot.slane %v1737, %v1759
    %v1761 = vadd.f32 %v1756, %v1760
    %v1762 = vpack.c.bf16 %v1761, %v1761
    %v1763 = vld [vmem:[#allocation5 + $0x4] sm:$0xf]
    %v1764 = vld [vmem:[#allocation5 + $0xc] sm:$0xf]
    %v1765 = vld [vmem:[#allocation5 + $0x14] sm:$0xf]
    %v1766 = vld [vmem:[#allocation5 + $0x1c] sm:$0xf]
    %v1767 = vld [vmem:[#allocation7 + $0x8] sm:$0x1]
    %v1768 = vlaneseq
    %v1769 = vshrl.u32 %v1768, 7
    %v1770 = vsub.s32 0, %v1769
    %v1771 = vrot.slane %v1767, %v1770
    %v1776 = vunpack.c.l.b16 %v1763
    %v1777 = vunpack.c.l.b16 %v1764
    %v1778 = vunpack.c.l.b16 %v1765
    %v1779 = vunpack.c.l.b16 %v1766
    %v1780 = vpack.c.b16 %v1777, %v1776
    %v1781 = vpack.c.b16 %v1779, %v1778
    %v1785 = vsel %vm262, %v1762, 0
    %1787 = vmatprep.subr.bf16.mxu0 0
    %1788 = vmatpush1.bf16.msra.mxu0 0
    %1789 = vmatprep.subr.bf16.mxu0 0
    %1790 = vmatpush1.bf16.msra.mxu0 0
    %1791 = vmatprep.subr.bf16.mxu0 0
    %1792 = vmatpush1.bf16.msra.mxu0 0
    %1793 = vmatprep.subr.bf16.mxu0 0
    %1794 = vmatpush1.bf16.msra.mxu0 0
    %1795 = vmatprep.subr.bf16.mxu0 0
    %1796 = vmatpush1.bf16.msra.mxu0 0
    %1797 = vmatprep.subr.bf16.mxu0 0
    %1798 = vmatpush1.bf16.msra.mxu0 0
    %1799 = vmatprep.subr.bf16.mxu0 0
    %1800 = vmatpush1.bf16.msra.mxu0 %v1781
    %1801 = vmatprep.subr.bf16.mxu0 0
    %1802 = vmatpush1.bf16.msra.mxu0 %v1780
    %1803 = vmatprep.subr.bf16.mxu0 0
    %1804 = vmatpush2.bf16.msra.mxu0 0
    %1805 = vmatprep.subr.bf16.mxu0 0
    %1806 = vmatpush2.bf16.msra.mxu0 0
    %1807 = vmatprep.subr.bf16.mxu0 0
    %1808 = vmatpush2.bf16.msra.mxu0 0
    %1809 = vmatprep.subr.bf16.mxu0 0
    %1810 = vmatpush2.bf16.msra.mxu0 0
    %1811 = vmatprep.subr.bf16.mxu0 0
    %1812 = vmatpush2.bf16.msra.mxu0 0
    %1813 = vmatprep.subr.bf16.mxu0 0
    %1814 = vmatpush2.bf16.msra.mxu0 0
    %1815 = vmatprep.subr.bf16.mxu0 0
    %1816 = vmatpush2.bf16.msra.mxu0 0
    %1817 = vmatprep.subr.bf16.mxu0 0
    %1818 = vmatpush2.bf16.msra.mxu0 0
    %1819 = vmatprep.mubr.bf16.mxu0 0
    %1820 = vmatmul.mubr.bf16.gmra.mxu0 %v1785
    %v1821 = vpop.f32.mrf.mxu0
    %v1822 = vadd.f32 %v1771, %v1821
    %v1823 = vpop.f32.mrf.mxu0
    %v1824 = vpop.f32.mrf.mxu0
    %v1825 = vpop.f32.mrf.mxu0
    %1826 = vdwg.mxu0
    %v1827 = vmul.f32 %v1822, %v1822
    %v1828 = vmul.f32 %v1822, %v1827
    %v1829 = vmul.f32 %v1828, 0.044715
    %v1830 = vadd.f32 %v1822, %v1829
    %v1831 = vmul.f32 %v1830, 0.7978846
    %v1832 = vtanh.pop %v1831
    %v1833 = vadd.f32 %v1832, 1.0
    %v1834 = vmul.f32 %v1833, 0.5
    %v1835 = vmul.f32 %v1822, %v1834
    %v1836 = vpack.c.bf16 %v1835, %v1835
    %v1837 = vld [vmem:[#allocation5 + $0x4] sm:$0xf]
    %v1838 = vld [vmem:[#allocation5 + $0xc] sm:$0xf]
    %v1839 = vld [vmem:[#allocation5 + $0x14] sm:$0xf]
    %v1840 = vld [vmem:[#allocation5 + $0x1c] sm:$0xf]
    %v1841 = vld [vmem:[#allocation5 + $0x24] sm:$0xf]
    %v1842 = vld [vmem:[#allocation5 + $0x2c] sm:$0xf]
    %v1843 = vld [vmem:[#allocation5 + $0x34] sm:$0xf]
    %v1844 = vld [vmem:[#allocation5 + $0x3c] sm:$0xf]
    %v1845 = vld [vmem:[#allocation7 + $0x9] sm:$0x1]
    %v1846 = vlaneseq
    %v1847 = vshrl.u32 %v1846, 7
    %v1848 = vsub.s32 0, %v1847
    %v1849 = vrot.slane %v1845, %v1848
    %v1858 = vunpack.c.l.b16 %v1837
    %v1859 = vunpack.c.l.b16 %v1838
    %v1860 = vunpack.c.l.b16 %v1839
    %v1861 = vunpack.c.l.b16 %v1840
    %v1862 = vunpack.c.l.b16 %v1841
    %v1863 = vunpack.c.l.b16 %v1842
    %v1864 = vunpack.c.l.b16 %v1843
    %v1865 = vunpack.c.l.b16 %v1844
    %v1866 = vpack.c.b16 %v1859, %v1858
    %v1867 = vpack.c.b16 %v1861, %v1860
    %v1868 = vpack.c.b16 %v1863, %v1862
    %v1869 = vpack.c.b16 %v1865, %v1864
    %1870 = vrot.lane.b32.xlu0 %v1866, 64
    %v1871 = vpop.permute.xlu0 %1870
    %1872 = vrot.lane.b32.xlu0 %v1867, 64
    %v1873 = vpop.permute.xlu0 %1872
    %1874 = vrot.lane.b32.xlu0 %v1868, 64
    %v1875 = vpop.permute.xlu0 %1874
    %1876 = vrot.lane.b32.xlu0 %v1869, 64
    %v1877 = vpop.permute.xlu0 %1876
    %vm1882 = vcmask 523264
    %v1884 = vsel %vm1882, %v1836, 0
    %1886 = vmatprep.subr.bf16.mxu0 0
    %1887 = vmatpush1.bf16.msra.mxu0 0
    %1888 = vmatprep.subr.bf16.mxu0 0
    %1889 = vmatpush1.bf16.msra.mxu0 0
    %1890 = vmatprep.subr.bf16.mxu0 0
    %1891 = vmatpush1.bf16.msra.mxu0 0
    %1892 = vmatprep.subr.bf16.mxu0 0
    %1893 = vmatpush1.bf16.msra.mxu0 0
    %1894 = vmatprep.subr.bf16.mxu0 0
    %1895 = vmatpush1.bf16.msra.mxu0 %v1877
    %1896 = vmatprep.subr.bf16.mxu0 0
    %1897 = vmatpush1.bf16.msra.mxu0 %v1875
    %1898 = vmatprep.subr.bf16.mxu0 0
    %1899 = vmatpush1.bf16.msra.mxu0 %v1873
    %1900 = vmatprep.subr.bf16.mxu0 0
    %1901 = vmatpush1.bf16.msra.mxu0 %v1871
    %1902 = vmatprep.subr.bf16.mxu0 0
    %1903 = vmatpush2.bf16.msra.mxu0 0
    %1904 = vmatprep.subr.bf16.mxu0 0
    %1905 = vmatpush2.bf16.msra.mxu0 0
    %1906 = vmatprep.subr.bf16.mxu0 0
    %1907 = vmatpush2.bf16.msra.mxu0 0
    %1908 = vmatprep.subr.bf16.mxu0 0
    %1909 = vmatpush2.bf16.msra.mxu0 0
    %1910 = vmatprep.subr.bf16.mxu0 0
    %1911 = vmatpush2.bf16.msra.mxu0 0
    %1912 = vmatprep.subr.bf16.mxu0 0
    %1913 = vmatpush2.bf16.msra.mxu0 0
    %1914 = vmatprep.subr.bf16.mxu0 0
    %1915 = vmatpush2.bf16.msra.mxu0 0
    %1916 = vmatprep.subr.bf16.mxu0 0
    %1917 = vmatpush2.bf16.msra.mxu0 0
    %1918 = vmatprep.mubr.bf16.mxu0 0
    %1919 = vmatmul.mubr.bf16.gmra.mxu0 %v1884
    %v1920 = vpop.f32.mrf.mxu0
    %v1921 = vadd.f32 %v1849, %v1920
    %v1922 = vpop.f32.mrf.mxu0
    %v1923 = vpop.f32.mrf.mxu0
    %v1924 = vpop.f32.mrf.mxu0
    %1925 = vdwg.mxu0
    %v1926 = vadd.f32 %v1761, %v1921
    %v1927 = vld [vmem:[#allocation7 + $0xc] sm:$0x1]
    %v1928 = vld [vmem:[#allocation7 + $0xd] sm:$0x1]
    %v1929 = vsel %vm262, %v1926, 0.0
    %1930 = vadd.xlane.f32.xlu0 %v1929
    %v1931 = vpop.xlane.xlu0 %1930
    %v1932 = vmul.f32 %v1931, %v1741
    %v1933 = vsub.f32 %v1926, %v1932
    %v1934 = vmul.f32 %v1933, %v1933
    %v1935 = vsel %vm262, %v1934, 0.0
    %1936 = vadd.xlane.f32.xlu0 %v1935
    %v1937 = vpop.xlane.xlu0 %1936
    %v1938 = vmul.f32 %v1937, %v1741
    %v1939 = vadd.f32 %v1938, 1e-05
    %v1940 = vrsqrt.pop %v1939
    %v1941 = vmul.f32 %v1933, %v1940
    %v1942 = vlaneseq
    %v1943 = vshrl.u32 %v1942, 7
    %v1944 = vsub.s32 0, %v1943
    %v1945 = vrot.slane %v1927, %v1944
    %v1946 = vmul.f32 %v1941, %v1945
    %v1947 = vlaneseq
    %v1948 = vshrl.u32 %v1947, 7
    %v1949 = vsub.s32 0, %v1948
    %v1950 = vrot.slane %v1928, %v1949
    %v1951 = vadd.f32 %v1946, %v1950
    %v1952 = vld [vmem:[#allocation7 + $0x3] sm:$0x1]
    %v1953 = vld [vmem:[#allocation7 + $0x4] sm:$0x1]
    %v1954 = vsel %vm262, %v1951, 0.0
    %1955 = vadd.xlane.f32.xlu0 %v1954
    %v1956 = vpop.xlane.xlu0 %1955
    %v1957 = vmul.f32 %v1956, %v1741
    %v1958 = vsub.f32 %v1951, %v1957
    %v1959 = vmul.f32 %v1958, %v1958
    %v1960 = vsel %vm262, %v1959, 0.0
    %1961 = vadd.xlane.f32.xlu0 %v1960
    %v1962 = vpop.xlane.xlu0 %1961
    %v1963 = vmul.f32 %v1962, %v1741
    %v1964 = vadd.f32 %v1963, 1e-05
    %v1965 = vrsqrt.pop %v1964
    %v1966 = vmul.f32 %v1958, %v1965
    %v1967 = vlaneseq
    %v1968 = vshrl.u32 %v1967, 7
    %v1969 = vsub.s32 0, %v1968
    %v1970 = vrot.slane %v1952, %v1969
    %v1971 = vmul.f32 %v1966, %v1970
    %v1972 = vlaneseq
    %v1973 = vshrl.u32 %v1972, 7
    %v1974 = vsub.s32 0, %v1973
    %v1975 = vrot.slane %v1953, %v1974
    %v1976 = vadd.f32 %v1971, %v1975
    %v1977 = vpack.c.bf16 %v1976, %v1976
    %v1978 = vld [vmem:[%s4] sm:$0xf]
    %v1979 = vld [vmem:[%s4 + $0x4] sm:$0xf]
    %v1980 = vld [vmem:[%s4 + $0x8] sm:$0xf]
    %v1981 = vld [vmem:[%s4 + $0xc] sm:$0xf]
    %v1982 = vld [vmem:[#allocation7 + $0x5] sm:$0x1]
    %v1983 = vlaneseq
    %v1984 = vshrl.u32 %v1983, 7
    %v1985 = vsub.s32 0, %v1984
    %v1986 = vrot.slane %v1982, %v1985
    %v1991 = vunpack.c.l.b16 %v1978
    %v1992 = vunpack.c.l.b16 %v1979
    %v1993 = vunpack.c.l.b16 %v1980
    %v1994 = vunpack.c.l.b16 %v1981
    %v1995 = vpack.c.b16 %v1992, %v1991
    %v1996 = vpack.c.b16 %v1994, %v1993
    %v2000 = vsel %vm262, %v1977, 0
    %2002 = vmatprep.subr.bf16.mxu0 0
    %2003 = vmatpush1.bf16.msra.mxu0 0
    %2004 = vmatprep.subr.bf16.mxu0 0
    %2005 = vmatpush1.bf16.msra.mxu0 0
    %2006 = vmatprep.subr.bf16.mxu0 0
    %2007 = vmatpush1.bf16.msra.mxu0 0
    %2008 = vmatprep.subr.bf16.mxu0 0
    %2009 = vmatpush1.bf16.msra.mxu0 0
    %2010 = vmatprep.subr.bf16.mxu0 0
    %2011 = vmatpush1.bf16.msra.mxu0 0
    %2012 = vmatprep.subr.bf16.mxu0 0
    %2013 = vmatpush1.bf16.msra.mxu0 0
    %2014 = vmatprep.subr.bf16.mxu0 0
    %2015 = vmatpush1.bf16.msra.mxu0 %v1996
    %2016 = vmatprep.subr.bf16.mxu0 0
    %2017 = vmatpush1.bf16.msra.mxu0 %v1995
    %2018 = vmatprep.subr.bf16.mxu0 0
    %2019 = vmatpush2.bf16.msra.mxu0 0
    %2020 = vmatprep.subr.bf16.mxu0 0
    %2021 = vmatpush2.bf16.msra.mxu0 0
    %2022 = vmatprep.subr.bf16.mxu0 0
    %2023 = vmatpush2.bf16.msra.mxu0 0
    %2024 = vmatprep.subr.bf16.mxu0 0
    %2025 = vmatpush2.bf16.msra.mxu0 0
    %2026 = vmatprep.subr.bf16.mxu0 0
    %2027 = vmatpush2.bf16.msra.mxu0 0
    %2028 = vmatprep.subr.bf16.mxu0 0
    %2029 = vmatpush2.bf16.msra.mxu0 0
    %2030 = vmatprep.subr.bf16.mxu0 0
    %2031 = vmatpush2.bf16.msra.mxu0 0
    %2032 = vmatprep.subr.bf16.mxu0 0
    %2033 = vmatpush2.bf16.msra.mxu0 0
    %2034 = vmatprep.mubr.bf16.mxu0 0
    %2035 = vmatmul.mubr.bf16.gmra.mxu0 %v2000
    %v2036 = vpop.f32.mrf.mxu0
    %v2037 = vadd.f32 %v1986, %v2036
    %v2038 = vpop.f32.mrf.mxu0
    %v2039 = vpop.f32.mrf.mxu0
    %v2040 = vpop.f32.mrf.mxu0
    %2041 = vdwg.mxu0
    %v2042 = vsub.f32 %v2037, %v98
    %v2043 = vadd.f32 %v89, 1e-10
    %s2045 = vtos %v2043
    %v2046 = vstv %s2045
    %v2048 = vrcp.pop %v2046
    %v2049 = vmul.f32 %v2042, %v2048
    %v2050 = vmul.f32 %v2049, %v86
    %v2051 = vadd.f32 %v2050, %v72
    %2052 = vst.msk [vmem:[#allocation8] sm:$0xff] %vm748, %v2051
    // Predicated region
    $region38: #{_lambda_.1} parent=1 // pred_check
      _
    $region39: #{_lambda_.1} parent=1 // pred_check_branch
      %2054 = sbr.rel (0) target = $region41
    $region40: #{_lambda_.1} parent=1 // pred_region
      %s2056 = ssub.s32 128, 128
      %2057 = vsyncadd [#allocation4], %s2056
      %s2059 = sshll.u32 [#allocation8], 4
      %s2060 = int_to_ptr.vmem [resolvable:$true] %s2059
      %2062 = dma.vmem_to_hbm [thread:$0]  %s2060, 128, %s6, [#allocation4]
    $region41: #{_lambda_.1} parent=1 // pred_fallthru
      _
    // Predicated region
    $region42: #{_lambda_.1} parent=1 // pred_check
      _
    $region43: #{_lambda_.1} parent=1 // pred_check_branch
      %2064 = sbr.rel (0) target = $region45
    $region44: #{_lambda_.1} parent=1 // pred_region
      %2065 = dma.done [#allocation4], 128
    $region45: #{_lambda_.1} parent=1 // pred_fallthru
      _
    %2066 = vsyncpa [#allocation3], 1
    %2067 = vsyncpa [#allocation6], 1
    %2068 = vsyncpa [#allocation4], 1

</llo_original>
